<compile_context>
chip_gen: v6e
topology: v6e:2x2x1
jax: 0.10.0
libtpu: 0.0.40
codegen_flags: <defaults>
</compile_context>

<pallas_src>
import functools

import jax
import jax.numpy as jnp
from jax.experimental import pallas as pl
from jax.experimental.pallas import tpu as pltpu

BN_EPS = 1e-5

# Keep the whole padded bf16 input resident in VMEM when it is at most this
# many bytes (x2 for Pallas buffering still fits comfortably under the default
# scoped-VMEM limit on v5e/v6e/v7x).
_RESIDENT_X_BYTES = 4 << 20


def _make_kernel(Wp, Wo, M_cols, shifts, inv_count, resident_x):
    """Builds the fused conv+BN+ReLU kernel with static geometry closed over."""

    def kernel(x_ref, w_ref, g_ref, b_ref, o_ref, sum_ref, ssq_ref):
        # x_ref : (N or 1, Cin_p, L)   bf16  -- zero-padded, flattened image(s)
        # w_ref : (9, Cout_p, Cin_p)   bf16  -- per-tap weights (resident)
        # g_ref/b_ref : (Cout_p, 1)    f32   -- BN gamma / beta (resident)
        # o_ref : (1, Cout_p, M_cols)  f32   -- per-image conv/BN/ReLU output
        # sum_ref/ssq_ref : (Cout_p,1) f32   -- persistent scratch:
        #     phase 0: global sum / sum-of-squares;  phase 1: scale / shift.
        ph = pl.program_id(0)   # 0: accumulate BN stats, 1: normalise + write
        n = pl.program_id(1)    # image index

        @pl.when(jnp.logical_and(ph == 0, n == 0))
        def _init():
            sum_ref[...] = jnp.zeros_like(sum_ref)
            ssq_ref[...] = jnp.zeros_like(ssq_ref)

        if resident_x:
            x = x_ref[n]        # whole batch resident; dynamic leading-axis load
        else:
            x = x_ref[0]        # per-image block streamed by Pallas

        # Fused im2col: 9 statically shifted views of the same VMEM block, one
        # small MXU matmul per tap, accumulated in f32.
        y = jnp.zeros(o_ref.shape[1:], dtype=jnp.float32)     # (Cout_p, M_cols)
        for t, s in enumerate(shifts):
            y = y + jnp.dot(w_ref[t], x[:, s:s + M_cols],
                            preferred_element_type=jnp.float32)

        @pl.when(ph == 0)
        def _stats():
            # Mask out the 2 "junk" columns per row (wrap-around of the
            # flattened padded layout) so BN stats cover exactly N*Ho*Wo.
            cols = jax.lax.broadcasted_iota(jnp.int32, (1, M_cols), 1)
            valid = (cols % Wp) < Wo
            ym = jnp.where(valid, y, 0.0)
            sum_ref[...] += jnp.sum(ym, axis=1, keepdims=True)
            ssq_ref[...] += jnp.sum(ym * ym, axis=1, keepdims=True)

        @pl.when(jnp.logical_and(ph == 1, n == 0))
        def _finalize_stats():
            # Fold BN into a per-channel scale/shift, computed once.
            mean = sum_ref[...] * inv_count                     # (Cout_p, 1)
            var = ssq_ref[...] * inv_count - mean * mean        # biased var
            scale = jax.lax.rsqrt(var + BN_EPS) * g_ref[...]
            shift = b_ref[...] - mean * scale
            sum_ref[...] = scale        # reuse stats scratch as scale
            ssq_ref[...] = shift        # ... and shift

        @pl.when(ph == 1)
        def _normalize():
            z = y * sum_ref[...] + ssq_ref[...]
            o_ref[0] = jnp.maximum(z, 0.0).astype(o_ref.dtype)

    return kernel


@functools.partial(jax.jit, static_argnames=("stride", "padding"))
def conv_block(x, weight, bias, gamma, beta, *, stride=1, padding=1):
    """x: (N, Cin, H, W) NCHW f32. weight: (Cout, Cin, 3, 3). Returns NCHW f32."""
    del bias  # cancels exactly under training-mode BatchNorm (y - mean)

    N, Cin, H, W = x.shape
    Cout, _, KH, KW = weight.shape
    assert stride == 1 and padding == 1 and KH == 3 and KW == 3, \
        "kernel specialised to k=3, s=1, p=1"

    Ho, Wo = H, W
    Wp = W + 2 * padding
    Hp = H + 2 * padding + 1      # +1 safety row: all tap-shifted reads stay in-bounds
    L = Hp * Wp                   # flattened padded image length
    M_cols = Ho * Wp              # columns computed per image (Wo valid + 2 junk per row)

    # Sublane-align the channel dims (multiple of 8); no lane padding needed
    # because the large flattened-spatial dim is the lane axis.
    Cin_p = ((Cin + 7) // 8) * 8
    Cout_p = ((Cout + 7) // 8) * 8

    # NCHW-native data prep: just pad (channels to Cin_p, spatial 1/1 + extra
    # bottom row) and flatten.  No transpose, no im2col in HBM.
    xp = jnp.pad(x, ((0, 0), (0, Cin_p - Cin),
                     (padding, padding + 1), (padding, padding)))
    x_flat = xp.reshape(N, Cin_p, L).astype(jnp.bfloat16)

    # Per-tap weights: w_taps[dh*3+dw] = weight[:, :, dh, dw], zero-padded.
    w_taps = weight.transpose(2, 3, 0, 1).reshape(KH * KW, Cout, Cin)
    w_taps = jnp.pad(w_taps, ((0, 0), (0, Cout_p - Cout), (0, Cin_p - Cin)))
    w_taps = w_taps.astype(jnp.bfloat16)

    g2 = jnp.pad(gamma.astype(jnp.float32), (0, Cout_p - Cout)).reshape(Cout_p, 1)
    b2 = jnp.pad(beta.astype(jnp.float32), (0, Cout_p - Cout)).reshape(Cout_p, 1)

    shifts = tuple(dh * Wp + dw for dh in range(KH) for dw in range(KW))
    inv_count = 1.0 / float(N * Ho * Wo)

    # Resident-input fast path: load the whole padded input into VMEM once and
    # reuse it across both phases; otherwise stream one image per grid step.
    resident_x = (N * Cin_p * L * 2) <= _RESIDENT_X_BYTES
    kernel = _make_kernel(Wp, Wo, M_cols, shifts, inv_count, resident_x)

    if resident_x:
        x_spec = pl.BlockSpec((N, Cin_p, L), lambda ph, n: (0, 0, 0))
    else:
        x_spec = pl.BlockSpec((1, Cin_p, L), lambda ph, n: (n, 0, 0))

    out = pl.pallas_call(
        kernel,
        out_shape=jax.ShapeDtypeStruct((N, Cout_p, M_cols), jnp.float32),
        grid_spec=pltpu.PrefetchScalarGridSpec(
            num_scalar_prefetch=0,
            grid=(2, N),  # (phase, image); phase 0 = stats, phase 1 = write
            in_specs=[
                x_spec,
                pl.BlockSpec((KH * KW, Cout_p, Cin_p), lambda ph, n: (0, 0, 0)),
                pl.BlockSpec((Cout_p, 1), lambda ph, n: (0, 0)),
                pl.BlockSpec((Cout_p, 1), lambda ph, n: (0, 0)),
            ],
            # ph*n keeps the output block resident during phase 0 (never
            # written there), so only real phase-1 data is ever written back.
            out_specs=pl.BlockSpec((1, Cout_p, M_cols), lambda ph, n: (ph * n, 0, 0)),
            scratch_shapes=[
                pltpu.VMEM((Cout_p, 1), jnp.float32),   # sum  -> (phase 1) scale
                pltpu.VMEM((Cout_p, 1), jnp.float32),   # ssq  -> (phase 1) shift
            ],
        ),
        compiler_params=pltpu.CompilerParams(
            # Both axes are sequential: phase 1 consumes the stats reduction
            # produced by phase 0, and the stat accumulation itself is a
            # cross-iteration reduction into shared scratch.  (A megacore-
            # parallel variant would emit per-core partial stats and combine
            # them in a second pallas_call.)
            dimension_semantics=("arbitrary", "arbitrary"),
        ),
    )(x_flat, w_taps, g2, b2)

    # (N, Cout_p, Ho*Wp) -> NCHW, dropping padded channels and junk columns.
    return out.reshape(N, Cout_p, Ho, Wp)[:, :Cout, :, :Wo]


def _reference(x, weight, bias, gamma, beta, *, stride=1, padding=1):
    y = jax.lax.conv_general_dilated(
        x, weight, window_strides=(stride, stride),
        padding=[(padding, padding), (padding, padding)],
        dimension_numbers=("NCHW", "OIHW", "NCHW"))
    y = y + bias[None, :, None, None]
    mean = jnp.mean(y, axis=(0, 2, 3), keepdims=True)
    var = jnp.mean((y - mean) ** 2, axis=(0, 2, 3), keepdims=True)
    z = (y - mean) * jax.lax.rsqrt(var + BN_EPS)
    z = z * gamma[None, :, None, None] + beta[None, :, None, None]
    return jnp.maximum(z, 0.0)


if __name__ == "__main__":
    key = jax.random.PRNGKey(0)
    k_x, k_w, k_b, k_g, k_be = jax.random.split(key, 5)

    N, Cin, H, W = 2, 4, 16, 16
    Cout, KH, KW = 8, 3, 3

    x = jax.random.normal(k_x, (N, Cin, H, W), dtype=jnp.float32)
    weight = jax.random.normal(k_w, (Cout, Cin, KH, KW), dtype=jnp.float32) * 0.1
    bias = jax.random.normal(k_b, (Cout,), dtype=jnp.float32) * 0.1
    gamma = 1.0 + 0.1 * jax.random.normal(k_g, (Cout,), dtype=jnp.float32)
    beta = 0.1 * jax.random.normal(k_be, (Cout,), dtype=jnp.float32)

    out = conv_block(x, weight, bias, gamma, beta, stride=1, padding=1)
    out = jax.block_until_ready(out)
    assert out.shape == (N, Cout, H, W), out.shape

    # Tight check: reference fed the same bf16-quantised conv inputs
    # (isolates kernel logic from bf16 input rounding).
    xq = x.astype(jnp.bfloat16).astype(jnp.float32)
    wq = weight.astype(jnp.bfloat16).astype(jnp.float32)
    ref_q = jax.block_until_ready(_reference(xq, wq, bias, gamma, beta))
    err_q = float(jnp.max(jnp.abs(out - ref_q)))
    assert err_q < 5e-3, err_q

    # Loose sanity check vs. the full-precision reference (bf16 operand drift).
    ref_f = jax.block_until_ready(_reference(x, weight, bias, gamma, beta))
    err_f = float(jnp.max(jnp.abs(out - ref_f)))
    assert err_f < 1e-1, err_f

    print("KERNEL_OK")
</pallas_src>

<mosaic_0001>
module attributes {stable_mosaic.version = 11 : i64} {
  func.func @kernel(%arg0: i32, %arg1: i32, %arg2: memref<2x8x342xbf16, #tpu.memory_space<vmem>>, %arg3: memref<9x8x8xbf16, #tpu.memory_space<vmem>>, %arg4: memref<8x1xf32, #tpu.memory_space<vmem>>, %arg5: memref<8x1xf32, #tpu.memory_space<vmem>>, %arg6: memref<1x8x288xf32, #tpu.memory_space<vmem>>, %arg7: memref<8x1xf32, #tpu.memory_space<vmem>>, %arg8: memref<8x1xf32, #tpu.memory_space<vmem>>) attributes {dimension_semantics = [#tpu.dimension_semantics<arbitrary>, #tpu.dimension_semantics<arbitrary>], iteration_bounds = array<i64: 2, 2>, scalar_prefetch = 0 : i64, scratch_operands = 2 : i64, tpu.core_type = #tpu.core_type<tc>, window_params = [{pipeline_mode = #tpu.pipeline_mode<synchronous>, transform_indices = @transform_0, window_bounds = array<i64: 2, 8, 342>}, {pipeline_mode = #tpu.pipeline_mode<synchronous>, transform_indices = @transform_1, window_bounds = array<i64: 9, 8, 8>}, {pipeline_mode = #tpu.pipeline_mode<synchronous>, transform_indices = @transform_2, window_bounds = array<i64: 8, 1>}, {pipeline_mode = #tpu.pipeline_mode<synchronous>, transform_indices = @transform_3, window_bounds = array<i64: 8, 1>}, {transform_indices = @transform_4, window_bounds = array<i64: 1, 8, 288>}]} {
    %c0_i32 = arith.constant 0 : i32
    %0 = arith.cmpi eq, %arg0, %c0_i32 : i32
    %c0_i32_0 = arith.constant 0 : i32
    %1 = arith.cmpi eq, %arg1, %c0_i32_0 : i32
    %2 = arith.andi %0, %1 : i1
    %3 = arith.extui %2 : i1 to i32
    %c0_i32_1 = arith.constant 0 : i32
    %4 = arith.cmpi ne, %3, %c0_i32_1 : i32
    scf.if %4 {
      %cst_37 = arith.constant 0.000000e+00 : f32
      %65 = vector.broadcast %cst_37 : f32 to vector<8x1xf32>
      %c0_38 = arith.constant 0 : index
      %c0_39 = arith.constant 0 : index
      %66 = vector.load %arg7[%c0_38, %c0_39] : memref<8x1xf32, #tpu.memory_space<vmem>>, vector<8x1xf32>
      tpu.vector_store %arg7[%c0_38, %c0_39], %65 {strides = array<i32>} : memref<8x1xf32, #tpu.memory_space<vmem>>, vector<8x1xf32>,
      %cst_40 = arith.constant 0.000000e+00 : f32
      %67 = vector.broadcast %cst_40 : f32 to vector<8x1xf32>
      %c0_41 = arith.constant 0 : index
      %c0_42 = arith.constant 0 : index
      %68 = vector.load %arg8[%c0_41, %c0_42] : memref<8x1xf32, #tpu.memory_space<vmem>>, vector<8x1xf32>
      tpu.vector_store %arg8[%c0_41, %c0_42], %67 {strides = array<i32>} : memref<8x1xf32, #tpu.memory_space<vmem>>, vector<8x1xf32>,
    } else {
    }
    %5 = arith.index_cast %arg1 : i32 to index
    %c0 = arith.constant 0 : index
    %c0_2 = arith.constant 0 : index
    %6 = vector.load %arg2[%5, %c0, %c0_2] : memref<2x8x342xbf16, #tpu.memory_space<vmem>>, vector<1x8x342xbf16>
    %7 = vector.shape_cast %6 : vector<1x8x342xbf16> to vector<8x342xbf16>
    %cst = arith.constant 0.000000e+00 : f32
    %8 = vector.broadcast %cst : f32 to vector<8x288xf32>
    %c0_3 = arith.constant 0 : index
    %c0_4 = arith.constant 0 : index
    %c0_5 = arith.constant 0 : index
    %9 = vector.load %arg3[%c0_3, %c0_4, %c0_5] : memref<9x8x8xbf16, #tpu.memory_space<vmem>>, vector<1x8x8xbf16>
    %10 = vector.shape_cast %9 : vector<1x8x8xbf16> to vector<8x8xbf16>
    %11 = vector.extract_strided_slice %7 {offsets = [0, 0], sizes = [8, 288], strides = [1, 1]} : vector<8x342xbf16> to vector<8x288xbf16>
    %cst_6 = arith.constant dense<0.000000e+00> : vector<8x288xf32>
    %12 = tpu.matmul %10, %11, %cst_6 {dimension_numbers = #tpu.dot_dimension_numbers<[1], [0], [0], [1], [0, 0, 1, 1], [], []>} : vector<8x8xbf16>, vector<8x288xbf16>, vector<8x288xf32> -> vector<8x288xf32>
    %13 = arith.addf %8, %12 : vector<8x288xf32>
    %c1 = arith.constant 1 : index
    %c0_7 = arith.constant 0 : index
    %c0_8 = arith.constant 0 : index
    %14 = vector.load %arg3[%c1, %c0_7, %c0_8] : memref<9x8x8xbf16, #tpu.memory_space<vmem>>, vector<1x8x8xbf16>
    %15 = vector.shape_cast %14 : vector<1x8x8xbf16> to vector<8x8xbf16>
    %16 = vector.extract_strided_slice %7 {offsets = [0, 1], sizes = [8, 288], strides = [1, 1]} : vector<8x342xbf16> to vector<8x288xbf16>
    %cst_9 = arith.constant dense<0.000000e+00> : vector<8x288xf32>
    %17 = tpu.matmul %15, %16, %cst_9 {dimension_numbers = #tpu.dot_dimension_numbers<[1], [0], [0], [1], [0, 0, 1, 1], [], []>} : vector<8x8xbf16>, vector<8x288xbf16>, vector<8x288xf32> -> vector<8x288xf32>
    %18 = arith.addf %13, %17 : vector<8x288xf32>
    %c2 = arith.constant 2 : index
    %c0_10 = arith.constant 0 : index
    %c0_11 = arith.constant 0 : index
    %19 = vector.load %arg3[%c2, %c0_10, %c0_11] : memref<9x8x8xbf16, #tpu.memory_space<vmem>>, vector<1x8x8xbf16>
    %20 = vector.shape_cast %19 : vector<1x8x8xbf16> to vector<8x8xbf16>
    %21 = vector.extract_strided_slice %7 {offsets = [0, 2], sizes = [8, 288], strides = [1, 1]} : vector<8x342xbf16> to vector<8x288xbf16>
    %cst_12 = arith.constant dense<0.000000e+00> : vector<8x288xf32>
    %22 = tpu.matmul %20, %21, %cst_12 {dimension_numbers = #tpu.dot_dimension_numbers<[1], [0], [0], [1], [0, 0, 1, 1], [], []>} : vector<8x8xbf16>, vector<8x288xbf16>, vector<8x288xf32> -> vector<8x288xf32>
    %23 = arith.addf %18, %22 : vector<8x288xf32>
    %c3 = arith.constant 3 : index
    %c0_13 = arith.constant 0 : index
    %c0_14 = arith.constant 0 : index
    %24 = vector.load %arg3[%c3, %c0_13, %c0_14] : memref<9x8x8xbf16, #tpu.memory_space<vmem>>, vector<1x8x8xbf16>
    %25 = vector.shape_cast %24 : vector<1x8x8xbf16> to vector<8x8xbf16>
    %26 = vector.extract_strided_slice %7 {offsets = [0, 18], sizes = [8, 288], strides = [1, 1]} : vector<8x342xbf16> to vector<8x288xbf16>
    %cst_15 = arith.constant dense<0.000000e+00> : vector<8x288xf32>
    %27 = tpu.matmul %25, %26, %cst_15 {dimension_numbers = #tpu.dot_dimension_numbers<[1], [0], [0], [1], [0, 0, 1, 1], [], []>} : vector<8x8xbf16>, vector<8x288xbf16>, vector<8x288xf32> -> vector<8x288xf32>
    %28 = arith.addf %23, %27 : vector<8x288xf32>
    %c4 = arith.constant 4 : index
    %c0_16 = arith.constant 0 : index
    %c0_17 = arith.constant 0 : index
    %29 = vector.load %arg3[%c4, %c0_16, %c0_17] : memref<9x8x8xbf16, #tpu.memory_space<vmem>>, vector<1x8x8xbf16>
    %30 = vector.shape_cast %29 : vector<1x8x8xbf16> to vector<8x8xbf16>
    %31 = vector.extract_strided_slice %7 {offsets = [0, 19], sizes = [8, 288], strides = [1, 1]} : vector<8x342xbf16> to vector<8x288xbf16>
    %cst_18 = arith.constant dense<0.000000e+00> : vector<8x288xf32>
    %32 = tpu.matmul %30, %31, %cst_18 {dimension_numbers = #tpu.dot_dimension_numbers<[1], [0], [0], [1], [0, 0, 1, 1], [], []>} : vector<8x8xbf16>, vector<8x288xbf16>, vector<8x288xf32> -> vector<8x288xf32>
    %33 = arith.addf %28, %32 : vector<8x288xf32>
    %c5 = arith.constant 5 : index
    %c0_19 = arith.constant 0 : index
    %c0_20 = arith.constant 0 : index
    %34 = vector.load %arg3[%c5, %c0_19, %c0_20] : memref<9x8x8xbf16, #tpu.memory_space<vmem>>, vector<1x8x8xbf16>
    %35 = vector.shape_cast %34 : vector<1x8x8xbf16> to vector<8x8xbf16>
    %36 = vector.extract_strided_slice %7 {offsets = [0, 20], sizes = [8, 288], strides = [1, 1]} : vector<8x342xbf16> to vector<8x288xbf16>
    %cst_21 = arith.constant dense<0.000000e+00> : vector<8x288xf32>
    %37 = tpu.matmul %35, %36, %cst_21 {dimension_numbers = #tpu.dot_dimension_numbers<[1], [0], [0], [1], [0, 0, 1, 1], [], []>} : vector<8x8xbf16>, vector<8x288xbf16>, vector<8x288xf32> -> vector<8x288xf32>
    %38 = arith.addf %33, %37 : vector<8x288xf32>
    %c6 = arith.constant 6 : index
    %c0_22 = arith.constant 0 : index
    %c0_23 = arith.constant 0 : index
    %39 = vector.load %arg3[%c6, %c0_22, %c0_23] : memref<9x8x8xbf16, #tpu.memory_space<vmem>>, vector<1x8x8xbf16>
    %40 = vector.shape_cast %39 : vector<1x8x8xbf16> to vector<8x8xbf16>
    %41 = vector.extract_strided_slice %7 {offsets = [0, 36], sizes = [8, 288], strides = [1, 1]} : vector<8x342xbf16> to vector<8x288xbf16>
    %cst_24 = arith.constant dense<0.000000e+00> : vector<8x288xf32>
    %42 = tpu.matmul %40, %41, %cst_24 {dimension_numbers = #tpu.dot_dimension_numbers<[1], [0], [0], [1], [0, 0, 1, 1], [], []>} : vector<8x8xbf16>, vector<8x288xbf16>, vector<8x288xf32> -> vector<8x288xf32>
    %43 = arith.addf %38, %42 : vector<8x288xf32>
    %c7 = arith.constant 7 : index
    %c0_25 = arith.constant 0 : index
    %c0_26 = arith.constant 0 : index
    %44 = vector.load %arg3[%c7, %c0_25, %c0_26] : memref<9x8x8xbf16, #tpu.memory_space<vmem>>, vector<1x8x8xbf16>
    %45 = vector.shape_cast %44 : vector<1x8x8xbf16> to vector<8x8xbf16>
    %46 = vector.extract_strided_slice %7 {offsets = [0, 37], sizes = [8, 288], strides = [1, 1]} : vector<8x342xbf16> to vector<8x288xbf16>
    %cst_27 = arith.constant dense<0.000000e+00> : vector<8x288xf32>
    %47 = tpu.matmul %45, %46, %cst_27 {dimension_numbers = #tpu.dot_dimension_numbers<[1], [0], [0], [1], [0, 0, 1, 1], [], []>} : vector<8x8xbf16>, vector<8x288xbf16>, vector<8x288xf32> -> vector<8x288xf32>
    %48 = arith.addf %43, %47 : vector<8x288xf32>
    %c8 = arith.constant 8 : index
    %c0_28 = arith.constant 0 : index
    %c0_29 = arith.constant 0 : index
    %49 = vector.load %arg3[%c8, %c0_28, %c0_29] : memref<9x8x8xbf16, #tpu.memory_space<vmem>>, vector<1x8x8xbf16>
    %50 = vector.shape_cast %49 : vector<1x8x8xbf16> to vector<8x8xbf16>
    %51 = vector.extract_strided_slice %7 {offsets = [0, 38], sizes = [8, 288], strides = [1, 1]} : vector<8x342xbf16> to vector<8x288xbf16>
    %cst_30 = arith.constant dense<0.000000e+00> : vector<8x288xf32>
    %52 = tpu.matmul %50, %51, %cst_30 {dimension_numbers = #tpu.dot_dimension_numbers<[1], [0], [0], [1], [0, 0, 1, 1], [], []>} : vector<8x8xbf16>, vector<8x288xbf16>, vector<8x288xf32> -> vector<8x288xf32>
    %53 = arith.addf %48, %52 : vector<8x288xf32>
    %c0_i32_31 = arith.constant 0 : i32
    %54 = arith.cmpi eq, %arg0, %c0_i32_31 : i32
    %55 = arith.extui %54 : i1 to i32
    %c0_i32_32 = arith.constant 0 : i32
    %56 = arith.cmpi ne, %55, %c0_i32_32 : i32
    scf.if %56 {
      %65 = tpu.iota {dimensions = array<i32: 1>} : vector<1x288xi32>
      %c18_i32 = arith.constant 18 : i32
      %c0_i32_37 = arith.constant 0 : i32
      %66 = arith.cmpi eq, %c18_i32, %c0_i32_37 : i32
      %c1_i32_38 = arith.constant 1 : i32
      %67 = arith.select %66, %c1_i32_38, %c18_i32 : i32
      %68 = vector.broadcast %67 : i32 to vector<1x288xi32>
      %69 = arith.remsi %65, %68 : vector<1x288xi32>
      %c0_i32_39 = arith.constant 0 : i32
      %70 = vector.broadcast %c0_i32_39 : i32 to vector<1x288xi32>
      %71 = arith.cmpi ne, %69, %70 : vector<1x288xi32>
      %c0_i32_40 = arith.constant 0 : i32
      %72 = vector.broadcast %c0_i32_40 : i32 to vector<1x288xi32>
      %73 = arith.cmpi slt, %69, %72 : vector<1x288xi32>
      %c0_i32_41 = arith.constant 0 : i32
      %74 = arith.cmpi slt, %67, %c0_i32_41 : i32
      %75 = vector.broadcast %74 : i1 to vector<1x288xi1>
      %76 = vector.broadcast %75 : vector<1x288xi1> to vector<1x288xi1>
      %77 = arith.xori %73, %76 : vector<1x288xi1>
      %78 = arith.andi %77, %71 : vector<1x288xi1>
      %79 = vector.broadcast %67 : i32 to vector<1x288xi32>
      %80 = arith.addi %69, %79 : vector<1x288xi32>
      %81 = arith.select %78, %80, %69 : vector<1x288xi1>, vector<1x288xi32>
      %c16_i32 = arith.constant 16 : i32
      %82 = vector.broadcast %c16_i32 : i32 to vector<1x288xi32>
      %83 = arith.cmpi slt, %81, %82 : vector<1x288xi32>
      %cst_42 = arith.constant 0.000000e+00 : f32
      %84 = vector.shape_cast %83 : vector<1x288xi1> to vector<1x288xi1>
      %85 = vector.broadcast %84 : vector<1x288xi1> to vector<8x288xi1>
      %86 = vector.broadcast %cst_42 : f32 to vector<8x288xf32>
      %87 = arith.select %85, %53, %86 : vector<8x288xi1>, vector<8x288xf32>
      %c0_43 = arith.constant 0 : index
      %c0_44 = arith.constant 0 : index
      %88 = vector.load %arg7[%c0_43, %c0_44] : memref<8x1xf32, #tpu.memory_space<vmem>>, vector<8x1xf32>
      %cst_45 = arith.constant dense<0.000000e+00> : vector<8xf32>
      %89 = vector.multi_reduction <add>, %87, %cst_45 [1] : vector<8x288xf32> to vector<8xf32>
      %90 = vector.shape_cast %89 : vector<8xf32> to vector<8x1xf32>
      %91 = arith.addf %88, %90 : vector<8x1xf32>
      %c0_46 = arith.constant 0 : index
      %c0_47 = arith.constant 0 : index
      %92 = vector.load %arg7[%c0_46, %c0_47] : memref<8x1xf32, #tpu.memory_space<vmem>>, vector<8x1xf32>
      tpu.vector_store %arg7[%c0_46, %c0_47], %91 {strides = array<i32>} : memref<8x1xf32, #tpu.memory_space<vmem>>, vector<8x1xf32>,
      %c0_48 = arith.constant 0 : index
      %c0_49 = arith.constant 0 : index
      %93 = vector.load %arg8[%c0_48, %c0_49] : memref<8x1xf32, #tpu.memory_space<vmem>>, vector<8x1xf32>
      %94 = arith.mulf %87, %87 : vector<8x288xf32>
      %cst_50 = arith.constant dense<0.000000e+00> : vector<8xf32>
      %95 = vector.multi_reduction <add>, %94, %cst_50 [1] : vector<8x288xf32> to vector<8xf32>
      %96 = vector.shape_cast %95 : vector<8xf32> to vector<8x1xf32>
      %97 = arith.addf %93, %96 : vector<8x1xf32>
      %c0_51 = arith.constant 0 : index
      %c0_52 = arith.constant 0 : index
      %98 = vector.load %arg8[%c0_51, %c0_52] : memref<8x1xf32, #tpu.memory_space<vmem>>, vector<8x1xf32>
      tpu.vector_store %arg8[%c0_51, %c0_52], %97 {strides = array<i32>} : memref<8x1xf32, #tpu.memory_space<vmem>>, vector<8x1xf32>,
    } else {
    }
    %c1_i32 = arith.constant 1 : i32
    %57 = arith.cmpi eq, %arg0, %c1_i32 : i32
    %c0_i32_33 = arith.constant 0 : i32
    %58 = arith.cmpi eq, %arg1, %c0_i32_33 : i32
    %59 = arith.andi %57, %58 : i1
    %60 = arith.extui %59 : i1 to i32
    %c0_i32_34 = arith.constant 0 : i32
    %61 = arith.cmpi ne, %60, %c0_i32_34 : i32
    scf.if %61 {
      %c0_37 = arith.constant 0 : index
      %c0_38 = arith.constant 0 : index
      %65 = vector.load %arg7[%c0_37, %c0_38] : memref<8x1xf32, #tpu.memory_space<vmem>>, vector<8x1xf32>
      %cst_39 = arith.constant 0.001953125 : f32
      %66 = vector.broadcast %cst_39 : f32 to vector<8x1xf32>
      %67 = arith.mulf %65, %66 : vector<8x1xf32>
      %c0_40 = arith.constant 0 : index
      %c0_41 = arith.constant 0 : index
      %68 = vector.load %arg8[%c0_40, %c0_41] : memref<8x1xf32, #tpu.memory_space<vmem>>, vector<8x1xf32>
      %cst_42 = arith.constant 0.001953125 : f32
      %69 = vector.broadcast %cst_42 : f32 to vector<8x1xf32>
      %70 = arith.mulf %68, %69 : vector<8x1xf32>
      %71 = arith.mulf %67, %67 : vector<8x1xf32>
      %72 = arith.subf %70, %71 : vector<8x1xf32>
      %cst_43 = arith.constant 9.99999974E-6 : f32
      %73 = vector.broadcast %cst_43 : f32 to vector<8x1xf32>
      %74 = arith.addf %72, %73 : vector<8x1xf32>
      %75 = math.rsqrt %74 : vector<8x1xf32>
      %c0_44 = arith.constant 0 : index
      %c0_45 = arith.constant 0 : index
      %76 = vector.load %arg4[%c0_44, %c0_45] : memref<8x1xf32, #tpu.memory_space<vmem>>, vector<8x1xf32>
      %77 = arith.mulf %75, %76 : vector<8x1xf32>
      %c0_46 = arith.constant 0 : index
      %c0_47 = arith.constant 0 : index
      %78 = vector.load %arg5[%c0_46, %c0_47] : memref<8x1xf32, #tpu.memory_space<vmem>>, vector<8x1xf32>
      %79 = arith.mulf %67, %77 : vector<8x1xf32>
      %80 = arith.subf %78, %79 : vector<8x1xf32>
      %c0_48 = arith.constant 0 : index
      %c0_49 = arith.constant 0 : index
      %81 = vector.load %arg7[%c0_48, %c0_49] : memref<8x1xf32, #tpu.memory_space<vmem>>, vector<8x1xf32>
      tpu.vector_store %arg7[%c0_48, %c0_49], %77 {strides = array<i32>} : memref<8x1xf32, #tpu.memory_space<vmem>>, vector<8x1xf32>,
      %c0_50 = arith.constant 0 : index
      %c0_51 = arith.constant 0 : index
      %82 = vector.load %arg8[%c0_50, %c0_51] : memref<8x1xf32, #tpu.memory_space<vmem>>, vector<8x1xf32>
      tpu.vector_store %arg8[%c0_50, %c0_51], %80 {strides = array<i32>} : memref<8x1xf32, #tpu.memory_space<vmem>>, vector<8x1xf32>,
    } else {
    }
    %c1_i32_35 = arith.constant 1 : i32
    %62 = arith.cmpi eq, %arg0, %c1_i32_35 : i32
    %63 = arith.extui %62 : i1 to i32
    %c0_i32_36 = arith.constant 0 : i32
    %64 = arith.cmpi ne, %63, %c0_i32_36 : i32
    scf.if %64 {
      %c0_37 = arith.constant 0 : index
      %c0_38 = arith.constant 0 : index
      %65 = vector.load %arg7[%c0_37, %c0_38] : memref<8x1xf32, #tpu.memory_space<vmem>>, vector<8x1xf32>
      %66 = vector.broadcast %65 : vector<8x1xf32> to vector<8x288xf32>
      %67 = arith.mulf %53, %66 : vector<8x288xf32>
      %c0_39 = arith.constant 0 : index
      %c0_40 = arith.constant 0 : index
      %68 = vector.load %arg8[%c0_39, %c0_40] : memref<8x1xf32, #tpu.memory_space<vmem>>, vector<8x1xf32>
      %69 = vector.broadcast %68 : vector<8x1xf32> to vector<8x288xf32>
      %70 = arith.addf %67, %69 : vector<8x288xf32>
      %cst_41 = arith.constant 0.000000e+00 : f32
      %71 = vector.broadcast %cst_41 : f32 to vector<8x288xf32>
      %72 = arith.maximumf %70, %71 : vector<8x288xf32>
      %c0_42 = arith.constant 0 : index
      %c0_43 = arith.constant 0 : index
      %c0_44 = arith.constant 0 : index
      %73 = vector.load %arg6[%c0_42, %c0_43, %c0_44] : memref<1x8x288xf32, #tpu.memory_space<vmem>>, vector<1x8x288xf32>
      %74 = vector.shape_cast %73 : vector<1x8x288xf32> to vector<8x288xf32>
      %75 = vector.shape_cast %72 : vector<8x288xf32> to vector<1x8x288xf32>
      tpu.vector_store %arg6[%c0_42, %c0_43, %c0_44], %75 {strides = array<i32>} : memref<1x8x288xf32, #tpu.memory_space<vmem>>, vector<1x8x288xf32>,
    } else {
    }
    return
  }
  func.func @transform_0(%arg0: i32, %arg1: i32) -> (i32, i32, i32) {
    %c0_i32 = arith.constant 0 : i32
    %c0_i32_0 = arith.constant 0 : i32
    %c0_i32_1 = arith.constant 0 : i32
    %c0_i32_2 = arith.constant 0 : i32
    return %c0_i32, %c0_i32_0, %c0_i32_1 : i32, i32, i32
  }
  func.func @transform_1(%arg0: i32, %arg1: i32) -> (i32, i32, i32) {
    %c0_i32 = arith.constant 0 : i32
    %c0_i32_0 = arith.constant 0 : i32
    %c0_i32_1 = arith.constant 0 : i32
    %c0_i32_2 = arith.constant 0 : i32
    return %c0_i32, %c0_i32_0, %c0_i32_1 : i32, i32, i32
  }
  func.func @transform_2(%arg0: i32, %arg1: i32) -> (i32, i32) {
    %c0_i32 = arith.constant 0 : i32
    %c0_i32_0 = arith.constant 0 : i32
    %c0_i32_1 = arith.constant 0 : i32
    return %c0_i32, %c0_i32_0 : i32, i32
  }
  func.func @transform_3(%arg0: i32, %arg1: i32) -> (i32, i32) {
    %c0_i32 = arith.constant 0 : i32
    %c0_i32_0 = arith.constant 0 : i32
    %c0_i32_1 = arith.constant 0 : i32
    return %c0_i32, %c0_i32_0 : i32, i32
  }
  func.func @transform_4(%arg0: i32, %arg1: i32) -> (i32, i32, i32) {
    %0 = arith.muli %arg0, %arg1 : i32
    %c0_i32 = arith.constant 0 : i32
    %c0_i32_0 = arith.constant 0 : i32
    %c0_i32_1 = arith.constant 0 : i32
    return %0, %c0_i32, %c0_i32_0 : i32, i32, i32
  }
}

</mosaic_0001>

<llo_original>
// kernel: conv_block.1
$region0: #{conv_block.1}
  #allocation0 [shape = 'u32[]', space=smem, size = 0x4, offset = 0x4, fixed_abs, tag = 'smem constant byte address 0x4 - core index']
  #allocation1 [shape = 'u32[144,128]{1,0:T(1,128)}', space=vmem, size = 0x12000, scoped, tag = 'internal scratch']
  #allocation2 [shape = 'f32[8,1]{1,0:T(8,128)}', space=vmem, size = 0x1000, scoped, tag = 'scratch operand']
  #allocation3 [shape = 'f32[8,1]{1,0:T(8,128)}', space=vmem, size = 0x1000, scoped, tag = 'scratch operand']
  %s0 = inlined_call_operand.vmem [shape: bf16[2,8,342], index: 0, kind: input, shape index: {}]
  %s1 = inlined_call_operand.vmem [shape: bf16[9,8,8], index: 1, kind: input, shape index: {}]
  %s2 = inlined_call_operand.vmem [shape: f32[8,1], index: 2, kind: input, shape index: {}]
  %s3 = inlined_call_operand.vmem [shape: f32[8,1], index: 3, kind: input, shape index: {}]
  %s4 = inlined_call_operand.vmem [shape: f32[2,8,288], index: 4, kind: output, shape index: {}]
  %s5 = sld [smem:[#allocation0]]
  $region65: #{conv_block.1} parent=0
    _
  %s7 = ssub.s32 1, %s5
  %s8 = scalar_select 0, %s7, %s5
  loop: start=0, step=1, limit=6
  $region2: #{conv_block.1} parent=0 // loop_pre_header
    _
  $region3: #{conv_block.1} parent=0 // loop_header
    %s10 = sphi 0, %s14
    %p11 = scmp.ge.s32.totalorder %s10, 6
    %s17 = sphi 0, %s29
    %s18 = sphi 0, %s25
    %s19 = sphi 0, %s17
    %s20 = sphi 0, %s18
    %s21 = sphi 0, %s19
    %s22 = sphi 0, %s20
    %s30 = sphi 0, %s30
    %s32 = sphi 0, %s30
    %s33 = sphi 0, %s32
    %s47 = sphi 0, %s33
    %s51 = sphi 0, %s51
    %s53 = sphi 0, %s51
    %s54 = sphi 0, %s53
    %s68 = sphi 0, %s54
    %s72 = sphi 0, %s72
    %s74 = sphi 0, %s72
    %s75 = sphi 0, %s74
    %s89 = sphi 0, %s75
    %s93 = sphi 0, %s93
    %s95 = sphi 0, %s93
    %s96 = sphi 0, %s95
    %s110 = sphi 0, %s96
    %s118 = sphi 0, %s120
    %s121 = sphi 0, %s118
    %s122 = sphi 0, %s121
    %s138 = sphi 0, %s122
  $region4: #{conv_block.1} parent=0 // loop_header_branch
    %13 = sbr.rel (%p11) target = $region8
  $region5: #{conv_block.1} parent=0 // loop_body
    %s15 = ssub.s32 %s10, 1
    %s16 = ssub.s32 %s10, 2
    %s23 = sadd.s32 1, %s18
    %p24 = scmp.ge.s32.totalorder %s23, 2
    %s25 = scalar_select %p24, 0, %s23
    %s26 = sadd.s32 1, %s17
    %s27 = scalar_select %p24, %s26, %s17
    %p28 = scmp.ge.s32.totalorder %s27, 2
    %s29 = scalar_select %p28, 0, %s27
    %s31 = sadd.s32 %s30, 1
    %p34 = scmp.eq.s32.totalorder %s10, 3
    %p35 = scmp.ne.s32.totalorder %s30, %s32
    %p36 = scmp.eq.s32.totalorder %s10, 0
    %p37 = por %p35, %p36
    %p38 = scmp.ne.s32.totalorder %s30, %s32
    %p39 = scmp.eq.s32.totalorder %s15, 3
    %p40 = por %p38, %p39
    %p41 = scmp.ne.s32.totalorder %s32, %s33
    %p42 = scmp.eq.s32.totalorder %s15, 0
    %p43 = por %p41, %p42
    %p44 = scmp.ne.s32.totalorder %s32, %s33
    %p45 = scmp.eq.s32.totalorder %s16, 3
    %p46 = por %p44, %p45
    %p48 = scmp.ne.s32.totalorder %s33, %s47
    %p49 = scmp.eq.s32.totalorder %s16, 0
    %p50 = por %p48, %p49
    %s52 = sadd.s32 %s51, 1
    %p55 = scmp.eq.s32.totalorder %s10, 3
    %p56 = scmp.ne.s32.totalorder %s51, %s53
    %p57 = scmp.eq.s32.totalorder %s10, 0
    %p58 = por %p56, %p57
    %p59 = scmp.ne.s32.totalorder %s51, %s53
    %p60 = scmp.eq.s32.totalorder %s15, 3
    %p61 = por %p59, %p60
    %p62 = scmp.ne.s32.totalorder %s53, %s54
    %p63 = scmp.eq.s32.totalorder %s15, 0
    %p64 = por %p62, %p63
    %p65 = scmp.ne.s32.totalorder %s53, %s54
    %p66 = scmp.eq.s32.totalorder %s16, 3
    %p67 = por %p65, %p66
    %p69 = scmp.ne.s32.totalorder %s54, %s68
    %p70 = scmp.eq.s32.totalorder %s16, 0
    %p71 = por %p69, %p70
    %s73 = sadd.s32 %s72, 1
    %p76 = scmp.eq.s32.totalorder %s10, 3
    %p77 = scmp.ne.s32.totalorder %s72, %s74
    %p78 = scmp.eq.s32.totalorder %s10, 0
    %p79 = por %p77, %p78
    %p80 = scmp.ne.s32.totalorder %s72, %s74
    %p81 = scmp.eq.s32.totalorder %s15, 3
    %p82 = por %p80, %p81
    %p83 = scmp.ne.s32.totalorder %s74, %s75
    %p84 = scmp.eq.s32.totalorder %s15, 0
    %p85 = por %p83, %p84
    %p86 = scmp.ne.s32.totalorder %s74, %s75
    %p87 = scmp.eq.s32.totalorder %s16, 3
    %p88 = por %p86, %p87
    %p90 = scmp.ne.s32.totalorder %s75, %s89
    %p91 = scmp.eq.s32.totalorder %s16, 0
    %p92 = por %p90, %p91
    %s94 = sadd.s32 %s93, 1
    %p97 = scmp.eq.s32.totalorder %s10, 3
    %p98 = scmp.ne.s32.totalorder %s93, %s95
    %p99 = scmp.eq.s32.totalorder %s10, 0
    %p100 = por %p98, %p99
    %p101 = scmp.ne.s32.totalorder %s93, %s95
    %p102 = scmp.eq.s32.totalorder %s15, 3
    %p103 = por %p101, %p102
    %p104 = scmp.ne.s32.totalorder %s95, %s96
    %p105 = scmp.eq.s32.totalorder %s15, 0
    %p106 = por %p104, %p105
    %p107 = scmp.ne.s32.totalorder %s95, %s96
    %p108 = scmp.eq.s32.totalorder %s16, 3
    %p109 = por %p107, %p108
    %p111 = scmp.ne.s32.totalorder %s96, %s110
    %p112 = scmp.eq.s32.totalorder %s16, 0
    %p113 = por %p111, %p112
    %s114 = smul.u32 %s17, %s18
    %s115 = smul.u32 %s29, %s25
    %s116 = ssub.s32 %s114, %s115
    %p117 = scmp.eq.s32.totalorder %s116, 0
    %s119 = sadd.s32 %s118, 1
    %s120 = scalar_select %p117, %s118, %s119
    %p123 = pneg %p117
    %p124 = scmp.eq.s32.totalorder %s10, 3
    %p125 = por %p123, %p124
    %p126 = scmp.ne.s32.totalorder %s118, %s121
    %p127 = scmp.eq.s32.totalorder %s10, 0
    %p128 = por %p126, %p127
    %p129 = scmp.ne.s32.totalorder %s118, %s121
    %p130 = scmp.eq.s32.totalorder %s15, 3
    %p131 = por %p129, %p130
    %p132 = scmp.ne.s32.totalorder %s121, %s122
    %p133 = scmp.eq.s32.totalorder %s15, 0
    %p134 = por %p132, %p133
    %p135 = scmp.ne.s32.totalorder %s121, %s122
    %p136 = scmp.eq.s32.totalorder %s16, 3
    %p137 = por %p135, %p136
    %p139 = scmp.ne.s32.totalorder %s122, %s138
    %p140 = scmp.eq.s32.totalorder %s16, 0
    %p141 = por %p139, %p140
    %p142 = scmp.le.s32.totalorder 1, %s10
    %p143 = scmp.lt.s32.totalorder %s10, 5
    %p144 = pnand %p142, %p143
    %p145 = pneg %p144
    // Predicated region
    $region9: #{conv_block.1} parent=5 // pred_check
      _
    $region10: #{conv_block.1} parent=5 // pred_check_branch
      %147 = sbr.rel (%p144) target = $region12
    $region11: #{conv_block.1} parent=5 // pred_region
      %s148 = ssub.s32 %s10, 1
      // Predicated region
      $region13: #{conv_block.1} parent=11 // pred_check
        %p149 = pneg %p43
      $region14: #{conv_block.1} parent=11 // pred_check_branch
        %151 = sbr.rel (%p149) target = $region16
      $region15: #{conv_block.1} parent=11 // pred_region
        _
      $region16: #{conv_block.1} parent=11 // pred_fallthru
        _
      // Predicated region
      $region17: #{conv_block.1} parent=11 // pred_check
        %p152 = pneg %p64
      $region18: #{conv_block.1} parent=11 // pred_check_branch
        %154 = sbr.rel (%p152) target = $region20
      $region19: #{conv_block.1} parent=11 // pred_region
        _
      $region20: #{conv_block.1} parent=11 // pred_fallthru
        _
      // Predicated region
      $region21: #{conv_block.1} parent=11 // pred_check
        %p155 = pneg %p85
      $region22: #{conv_block.1} parent=11 // pred_check_branch
        %157 = sbr.rel (%p155) target = $region24
      $region23: #{conv_block.1} parent=11 // pred_region
        _
      $region24: #{conv_block.1} parent=11 // pred_fallthru
        _
      // Predicated region
      $region25: #{conv_block.1} parent=11 // pred_check
        %p158 = pneg %p106
      $region26: #{conv_block.1} parent=11 // pred_check_branch
        %160 = sbr.rel (%p158) target = $region28
      $region27: #{conv_block.1} parent=11 // pred_region
        _
      $region28: #{conv_block.1} parent=11 // pred_fallthru
        _
    $region12: #{conv_block.1} parent=5 // pred_fallthru
      _
    %p161 = scmp.lt.s32.totalorder %s10, 4
    // Predicated region
    $region29: #{conv_block.1} parent=5 // pred_check
      %p162 = pneg %p161
    $region30: #{conv_block.1} parent=5 // pred_check_branch
      %164 = sbr.rel (%p162) target = $region32
    $region31: #{conv_block.1} parent=5 // pred_region
      _
    $region32: #{conv_block.1} parent=5 // pred_fallthru
      _
    %p165 = scmp.le.s32.totalorder 1, %s10
    %p166 = scmp.lt.s32.totalorder %s10, 5
    %p167 = pnand %p165, %p166
    %p168 = pneg %p167
    // Predicated region
    $region33: #{conv_block.1} parent=5 // pred_check
      _
    $region34: #{conv_block.1} parent=5 // pred_check_branch
      %170 = sbr.rel (%p167) target = $region36
    $region35: #{conv_block.1} parent=5 // pred_region
      %s171 = ssub.s32 %s10, 1
      %p172 = pneg %p43
      %p173 = pneg %p40
      %p174 = pneg %p64
      %p175 = pneg %p61
      %p176 = pneg %p85
      %p177 = pneg %p82
      %p178 = pneg %p106
      %p179 = pneg %p103
      %p180 = pneg %p134
      %p181 = pneg %p131
      %s182 = smul.u32 %s19, %s20
      %p183 = scmp.lt.s32.totalorder %s182, 1
      %s184 = scalar_select %p183, %s182, 1
      %s185 = smul.addr %s184, 3
      %s186 = smul.addr %s185, 8
      %s187 = scalar_lea.vmem %s4, %s186
      %s188 = smul.u32 %s19, %s20
      %p189 = scmp.lt.s32.totalorder %s188, 1
      %s190 = scalar_select %p189, %s188, 1
      %s191 = smul.addr %s190, 3
      %s192 = smul.addr %s191, 8
      %s193 = scalar_lea.vmem %s4, %s192
      %s194 = smul.u32 %s19, %s20
      %p196 = scmp.eq.s32.totalorder %s19, 0
      %p197 = scmp.eq.s32.totalorder %s20, 0
      %p198 = pnand %p196, %p197
      %p199 = pneg %p198
      // Predicated region
      $region37: #{conv_block.1} parent=35 // pred_check
        _
      $region38: #{conv_block.1} parent=35 // pred_check_branch
        %201 = sbr.rel (%p198) target = $region40
      $region39: #{conv_block.1} parent=35 // pred_region
        %vm202 = vcmask 7168
        %203 = vst.msk [vmem:[#allocation2] sm:$0xff] %vm202, 0.0
        %204 = vst.msk [vmem:[#allocation3] sm:$0xff] %vm202, 0.0
      $region40: #{conv_block.1} parent=35 // pred_fallthru
        _
      %s205 = smul.u32 %s20, 3
      %s206 = smul.addr %s205, 4
      %s207 = scalar_lea.vmem %s0, %s206
      %v208 = vld [vmem:[%s207] sm:$0xff]
      %v209 = vld [vmem:[%s207 + $0x8] sm:$0xf]
      %v210 = vld [vmem:[%s1] sm:$0xf]
      %s211 = scalar_lea.vmem %s1, 4
      %v212 = vld [vmem:[%s211] sm:$0xf]
      %v215 = vunpack.c.l.b16 %v208
      %v216 = vunpack.c.h.b16 %v208
      %v217 = vunpack.c.l.b16 %v209
      %v218 = vpack.c.b16 %v215, %v215
      %v219 = vpack.c.b16 %v216, %v216
      %v220 = vpack.c.b16 %v217, %v217
      %221 = vrot.lane.b32.xlu0 %v218, 127
      %v222 = vpop.permute.xlu0 %221
      %223 = vrot.lane.b32.xlu0 %v219, 127
      %v224 = vpop.permute.xlu0 %223
      %225 = vrot.lane.b32.xlu0 %v220, 127
      %v226 = vpop.permute.xlu0 %225
      %vm227 = vcmask 1039360
      %v228 = vsel %vm227, %v222, %v224
      %v229 = vsel %vm227, %v224, %v226
      %vm230 = vcmask 64512
      %v232 = vsel %vm230, %v212, 0
      %vm234 = vcmask 1043456
      %v236 = vsel %vm234, %v228, 0
      %v239 = vsel %vm234, %v229, 0
      %v242 = vsel %vm234, %v226, 0
      %244 = vmatprep.subr.bf16.mxu0 0
      %245 = vmatpush1.bf16.msra.mxu0 0
      %246 = vmatprep.subr.bf16.mxu0 0
      %247 = vmatpush1.bf16.msra.mxu0 0
      %248 = vmatprep.subr.bf16.mxu0 0
      %249 = vmatpush1.bf16.msra.mxu0 0
      %250 = vmatprep.subr.bf16.mxu0 0
      %251 = vmatpush1.bf16.msra.mxu0 0
      %252 = vmatprep.subr.bf16.mxu0 0
      %253 = vmatpush1.bf16.msra.mxu0 0
      %254 = vmatprep.subr.bf16.mxu0 0
      %255 = vmatpush1.bf16.msra.mxu0 0
      %256 = vmatprep.subr.bf16.mxu0 0
      %257 = vmatpush1.bf16.msra.mxu0 0
      %258 = vmatprep.subr.bf16.mxu0 %v239
      %259 = vmatpush1.bf16.msra.mxu0 %v236
      %260 = vmatprep.subr.bf16.mxu0 0
      %261 = vmatpush2.bf16.msra.mxu0 0
      %262 = vmatprep.subr.bf16.mxu0 0
      %263 = vmatpush2.bf16.msra.mxu0 0
      %264 = vmatprep.subr.bf16.mxu0 0
      %265 = vmatpush2.bf16.msra.mxu0 0
      %266 = vmatprep.subr.bf16.mxu0 0
      %267 = vmatpush2.bf16.msra.mxu0 0
      %268 = vmatprep.subr.bf16.mxu0 0
      %269 = vmatpush2.bf16.msra.mxu0 0
      %270 = vmatprep.subr.bf16.mxu0 0
      %271 = vmatpush2.bf16.msra.mxu0 0
      %272 = vmatprep.subr.bf16.mxu0 0
      %273 = vmatpush2.bf16.msra.mxu0 0
      %274 = vmatprep.subr.bf16.mxu0 0
      %275 = vmatpush2.bf16.msra.mxu0 0
      %276 = vmatprep.mubr.bf16.mxu0 0
      %277 = vmatmul.mubr.bf16.gmra.mxu0 %v232
      %v278 = vpop.f32.mrf.mxu0
      %v279 = vadd.f32 0.0, %v278
      %v280 = vpop.f32.mrf.mxu0
      %v281 = vadd.f32 0.0, %v280
      %v282 = vpop.f32.mrf.mxu0
      %v283 = vpop.f32.mrf.mxu0
      %284 = vdwg.mxu0
      %285 = vmatprep.subr.bf16.mxu0 0
      %286 = vmatpush1.bf16.msra.mxu0 0
      %287 = vmatprep.subr.bf16.mxu0 0
      %288 = vmatpush1.bf16.msra.mxu0 0
      %289 = vmatprep.subr.bf16.mxu0 0
      %290 = vmatpush1.bf16.msra.mxu0 0
      %291 = vmatprep.subr.bf16.mxu0 0
      %292 = vmatpush1.bf16.msra.mxu0 0
      %293 = vmatprep.subr.bf16.mxu0 0
      %294 = vmatpush1.bf16.msra.mxu0 0
      %295 = vmatprep.subr.bf16.mxu0 0
      %296 = vmatpush1.bf16.msra.mxu0 0
      %297 = vmatprep.subr.bf16.mxu0 0
      %298 = vmatpush1.bf16.msra.mxu0 0
      %299 = vmatprep.subr.bf16.mxu0 0
      %300 = vmatpush1.bf16.msra.mxu0 %v242
      %301 = vmatprep.subr.bf16.mxu0 0
      %302 = vmatpush2.bf16.msra.mxu0 0
      %303 = vmatprep.subr.bf16.mxu0 0
      %304 = vmatpush2.bf16.msra.mxu0 0
      %305 = vmatprep.subr.bf16.mxu0 0
      %306 = vmatpush2.bf16.msra.mxu0 0
      %307 = vmatprep.subr.bf16.mxu0 0
      %308 = vmatpush2.bf16.msra.mxu0 0
      %309 = vmatprep.subr.bf16.mxu0 0
      %310 = vmatpush2.bf16.msra.mxu0 0
      %311 = vmatprep.subr.bf16.mxu0 0
      %312 = vmatpush2.bf16.msra.mxu0 0
      %313 = vmatprep.subr.bf16.mxu0 0
      %314 = vmatpush2.bf16.msra.mxu0 0
      %315 = vmatprep.subr.bf16.mxu0 0
      %316 = vmatpush2.bf16.msra.mxu0 0
      %317 = vmatprep.mubr.bf16.mxu0 0
      %318 = vmatmul.mubr.bf16.gmra.mxu0 %v232
      %v319 = vpop.f32.mrf.mxu0
      %v320 = vadd.f32 0.0, %v319
      %v321 = vpop.f32.mrf.mxu0
      %v322 = vpop.f32.mrf.mxu0
      %v323 = vpop.f32.mrf.mxu0
      %324 = vdwg.mxu0
      %v326 = vsel %vm230, %v210, 0
      %v329 = vsel %vm234, %v218, 0
      %v332 = vsel %vm234, %v219, 0
      %v335 = vsel %vm234, %v220, 0
      %337 = vmatprep.subr.bf16.mxu0 0
      %338 = vmatpush1.bf16.msra.mxu0 0
      %339 = vmatprep.subr.bf16.mxu0 0
      %340 = vmatpush1.bf16.msra.mxu0 0
      %341 = vmatprep.subr.bf16.mxu0 0
      %342 = vmatpush1.bf16.msra.mxu0 0
      %343 = vmatprep.subr.bf16.mxu0 0
      %344 = vmatpush1.bf16.msra.mxu0 0
      %345 = vmatprep.subr.bf16.mxu0 0
      %346 = vmatpush1.bf16.msra.mxu0 0
      %347 = vmatprep.subr.bf16.mxu0 0
      %348 = vmatpush1.bf16.msra.mxu0 0
      %349 = vmatprep.subr.bf16.mxu0 0
      %350 = vmatpush1.bf16.msra.mxu0 0
      %351 = vmatprep.subr.bf16.mxu0 %v332
      %352 = vmatpush1.bf16.msra.mxu0 %v329
      %353 = vmatprep.subr.bf16.mxu0 0
      %354 = vmatpush2.bf16.msra.mxu0 0
      %355 = vmatprep.subr.bf16.mxu0 0
      %356 = vmatpush2.bf16.msra.mxu0 0
      %357 = vmatprep.subr.bf16.mxu0 0
      %358 = vmatpush2.bf16.msra.mxu0 0
      %359 = vmatprep.subr.bf16.mxu0 0
      %360 = vmatpush2.bf16.msra.mxu0 0
      %361 = vmatprep.subr.bf16.mxu0 0
      %362 = vmatpush2.bf16.msra.mxu0 0
      %363 = vmatprep.subr.bf16.mxu0 0
      %364 = vmatpush2.bf16.msra.mxu0 0
      %365 = vmatprep.subr.bf16.mxu0 0
      %366 = vmatpush2.bf16.msra.mxu0 0
      %367 = vmatprep.subr.bf16.mxu0 0
      %368 = vmatpush2.bf16.msra.mxu0 0
      %369 = vmatprep.mubr.bf16.mxu0 0
      %370 = vmatmul.mubr.bf16.gmra.mxu0 %v326
      %v371 = vpop.f32.mrf.mxu0
      %v372 = vadd.f32 %v279, %v371
      %v373 = vpop.f32.mrf.mxu0
      %v374 = vadd.f32 %v281, %v373
      %v375 = vpop.f32.mrf.mxu0
      %v376 = vpop.f32.mrf.mxu0
      %377 = vdwg.mxu0
      %378 = vmatprep.subr.bf16.mxu0 0
      %379 = vmatpush1.bf16.msra.mxu0 0
      %380 = vmatprep.subr.bf16.mxu0 0
      %381 = vmatpush1.bf16.msra.mxu0 0
      %382 = vmatprep.subr.bf16.mxu0 0
      %383 = vmatpush1.bf16.msra.mxu0 0
      %384 = vmatprep.subr.bf16.mxu0 0
      %385 = vmatpush1.bf16.msra.mxu0 0
      %386 = vmatprep.subr.bf16.mxu0 0
      %387 = vmatpush1.bf16.msra.mxu0 0
      %388 = vmatprep.subr.bf16.mxu0 0
      %389 = vmatpush1.bf16.msra.mxu0 0
      %390 = vmatprep.subr.bf16.mxu0 0
      %391 = vmatpush1.bf16.msra.mxu0 0
      %392 = vmatprep.subr.bf16.mxu0 0
      %393 = vmatpush1.bf16.msra.mxu0 %v335
      %394 = vmatprep.subr.bf16.mxu0 0
      %395 = vmatpush2.bf16.msra.mxu0 0
      %396 = vmatprep.subr.bf16.mxu0 0
      %397 = vmatpush2.bf16.msra.mxu0 0
      %398 = vmatprep.subr.bf16.mxu0 0
      %399 = vmatpush2.bf16.msra.mxu0 0
      %400 = vmatprep.subr.bf16.mxu0 0
      %401 = vmatpush2.bf16.msra.mxu0 0
      %402 = vmatprep.subr.bf16.mxu0 0
      %403 = vmatpush2.bf16.msra.mxu0 0
      %404 = vmatprep.subr.bf16.mxu0 0
      %405 = vmatpush2.bf16.msra.mxu0 0
      %406 = vmatprep.subr.bf16.mxu0 0
      %407 = vmatpush2.bf16.msra.mxu0 0
      %408 = vmatprep.subr.bf16.mxu0 0
      %409 = vmatpush2.bf16.msra.mxu0 0
      %410 = vmatprep.mubr.bf16.mxu0 0
      %411 = vmatmul.mubr.bf16.gmra.mxu0 %v326
      %v412 = vpop.f32.mrf.mxu0
      %v413 = vadd.f32 %v320, %v412
      %v414 = vpop.f32.mrf.mxu0
      %v415 = vpop.f32.mrf.mxu0
      %v416 = vpop.f32.mrf.mxu0
      %417 = vdwg.mxu0
      %s418 = scalar_lea.vmem %s1, 8
      %v419 = vld [vmem:[%s418] sm:$0xf]
      %420 = vrot.lane.b32.xlu0 %v218, 126
      %v421 = vpop.permute.xlu0 %420
      %422 = vrot.lane.b32.xlu0 %v219, 126
      %v423 = vpop.permute.xlu0 %422
      %424 = vrot.lane.b32.xlu0 %v220, 126
      %v425 = vpop.permute.xlu0 %424
      %vm426 = vcmask 1031168
      %v427 = vsel %vm426, %v421, %v423
      %v428 = vsel %vm426, %v423, %v425
      %v430 = vsel %vm230, %v419, 0
      %v433 = vsel %vm234, %v427, 0
      %v436 = vsel %vm234, %v428, 0
      %v439 = vsel %vm234, %v425, 0
      %441 = vmatprep.subr.bf16.mxu0 0
      %442 = vmatpush1.bf16.msra.mxu0 0
      %443 = vmatprep.subr.bf16.mxu0 0
      %444 = vmatpush1.bf16.msra.mxu0 0
      %445 = vmatprep.subr.bf16.mxu0 0
      %446 = vmatpush1.bf16.msra.mxu0 0
      %447 = vmatprep.subr.bf16.mxu0 0
      %448 = vmatpush1.bf16.msra.mxu0 0
      %449 = vmatprep.subr.bf16.mxu0 0
      %450 = vmatpush1.bf16.msra.mxu0 0
      %451 = vmatprep.subr.bf16.mxu0 0
      %452 = vmatpush1.bf16.msra.mxu0 0
      %453 = vmatprep.subr.bf16.mxu0 0
      %454 = vmatpush1.bf16.msra.mxu0 0
      %455 = vmatprep.subr.bf16.mxu0 %v436
      %456 = vmatpush1.bf16.msra.mxu0 %v433
      %457 = vmatprep.subr.bf16.mxu0 0
      %458 = vmatpush2.bf16.msra.mxu0 0
      %459 = vmatprep.subr.bf16.mxu0 0
      %460 = vmatpush2.bf16.msra.mxu0 0
      %461 = vmatprep.subr.bf16.mxu0 0
      %462 = vmatpush2.bf16.msra.mxu0 0
      %463 = vmatprep.subr.bf16.mxu0 0
      %464 = vmatpush2.bf16.msra.mxu0 0
      %465 = vmatprep.subr.bf16.mxu0 0
      %466 = vmatpush2.bf16.msra.mxu0 0
      %467 = vmatprep.subr.bf16.mxu0 0
      %468 = vmatpush2.bf16.msra.mxu0 0
      %469 = vmatprep.subr.bf16.mxu0 0
      %470 = vmatpush2.bf16.msra.mxu0 0
      %471 = vmatprep.subr.bf16.mxu0 0
      %472 = vmatpush2.bf16.msra.mxu0 0
      %473 = vmatprep.mubr.bf16.mxu0 0
      %474 = vmatmul.mubr.bf16.gmra.mxu0 %v430
      %v475 = vpop.f32.mrf.mxu0
      %v476 = vadd.f32 0.0, %v475
      %v477 = vpop.f32.mrf.mxu0
      %v478 = vadd.f32 0.0, %v477
      %v479 = vpop.f32.mrf.mxu0
      %v480 = vpop.f32.mrf.mxu0
      %481 = vdwg.mxu0
      %482 = vmatprep.subr.bf16.mxu0 0
      %483 = vmatpush1.bf16.msra.mxu0 0
      %484 = vmatprep.subr.bf16.mxu0 0
      %485 = vmatpush1.bf16.msra.mxu0 0
      %486 = vmatprep.subr.bf16.mxu0 0
      %487 = vmatpush1.bf16.msra.mxu0 0
      %488 = vmatprep.subr.bf16.mxu0 0
      %489 = vmatpush1.bf16.msra.mxu0 0
      %490 = vmatprep.subr.bf16.mxu0 0
      %491 = vmatpush1.bf16.msra.mxu0 0
      %492 = vmatprep.subr.bf16.mxu0 0
      %493 = vmatpush1.bf16.msra.mxu0 0
      %494 = vmatprep.subr.bf16.mxu0 0
      %495 = vmatpush1.bf16.msra.mxu0 0
      %496 = vmatprep.subr.bf16.mxu0 0
      %497 = vmatpush1.bf16.msra.mxu0 %v439
      %498 = vmatprep.subr.bf16.mxu0 0
      %499 = vmatpush2.bf16.msra.mxu0 0
      %500 = vmatprep.subr.bf16.mxu0 0
      %501 = vmatpush2.bf16.msra.mxu0 0
      %502 = vmatprep.subr.bf16.mxu0 0
      %503 = vmatpush2.bf16.msra.mxu0 0
      %504 = vmatprep.subr.bf16.mxu0 0
      %505 = vmatpush2.bf16.msra.mxu0 0
      %506 = vmatprep.subr.bf16.mxu0 0
      %507 = vmatpush2.bf16.msra.mxu0 0
      %508 = vmatprep.subr.bf16.mxu0 0
      %509 = vmatpush2.bf16.msra.mxu0 0
      %510 = vmatprep.subr.bf16.mxu0 0
      %511 = vmatpush2.bf16.msra.mxu0 0
      %512 = vmatprep.subr.bf16.mxu0 0
      %513 = vmatpush2.bf16.msra.mxu0 0
      %514 = vmatprep.mubr.bf16.mxu0 0
      %515 = vmatmul.mubr.bf16.gmra.mxu0 %v430
      %v516 = vpop.f32.mrf.mxu0
      %v517 = vadd.f32 0.0, %v516
      %v518 = vpop.f32.mrf.mxu0
      %v519 = vpop.f32.mrf.mxu0
      %v520 = vpop.f32.mrf.mxu0
      %521 = vdwg.mxu0
      %v522 = vadd.f32 %v372, %v476
      %v523 = vadd.f32 %v374, %v478
      %v524 = vadd.f32 %v413, %v517
      %s525 = scalar_lea.vmem %s1, 12
      %v526 = vld [vmem:[%s525] sm:$0xf]
      %527 = vrot.lane.b32.xlu0 %v218, 110
      %v528 = vpop.permute.xlu0 %527
      %529 = vrot.lane.b32.xlu0 %v219, 110
      %v530 = vpop.permute.xlu0 %529
      %531 = vrot.lane.b32.xlu0 %v220, 110
      %v532 = vpop.permute.xlu0 %531
      %vm533 = vcmask 900096
      %v534 = vsel %vm533, %v528, %v530
      %v535 = vsel %vm533, %v530, %v532
      %v537 = vsel %vm230, %v526, 0
      %v540 = vsel %vm234, %v534, 0
      %v543 = vsel %vm234, %v535, 0
      %v546 = vsel %vm234, %v532, 0
      %548 = vmatprep.subr.bf16.mxu0 0
      %549 = vmatpush1.bf16.msra.mxu0 0
      %550 = vmatprep.subr.bf16.mxu0 0
      %551 = vmatpush1.bf16.msra.mxu0 0
      %552 = vmatprep.subr.bf16.mxu0 0
      %553 = vmatpush1.bf16.msra.mxu0 0
      %554 = vmatprep.subr.bf16.mxu0 0
      %555 = vmatpush1.bf16.msra.mxu0 0
      %556 = vmatprep.subr.bf16.mxu0 0
      %557 = vmatpush1.bf16.msra.mxu0 0
      %558 = vmatprep.subr.bf16.mxu0 0
      %559 = vmatpush1.bf16.msra.mxu0 0
      %560 = vmatprep.subr.bf16.mxu0 0
      %561 = vmatpush1.bf16.msra.mxu0 0
      %562 = vmatprep.subr.bf16.mxu0 %v543
      %563 = vmatpush1.bf16.msra.mxu0 %v540
      %564 = vmatprep.subr.bf16.mxu0 0
      %565 = vmatpush2.bf16.msra.mxu0 0
      %566 = vmatprep.subr.bf16.mxu0 0
      %567 = vmatpush2.bf16.msra.mxu0 0
      %568 = vmatprep.subr.bf16.mxu0 0
      %569 = vmatpush2.bf16.msra.mxu0 0
      %570 = vmatprep.subr.bf16.mxu0 0
      %571 = vmatpush2.bf16.msra.mxu0 0
      %572 = vmatprep.subr.bf16.mxu0 0
      %573 = vmatpush2.bf16.msra.mxu0 0
      %574 = vmatprep.subr.bf16.mxu0 0
      %575 = vmatpush2.bf16.msra.mxu0 0
      %576 = vmatprep.subr.bf16.mxu0 0
      %577 = vmatpush2.bf16.msra.mxu0 0
      %578 = vmatprep.subr.bf16.mxu0 0
      %579 = vmatpush2.bf16.msra.mxu0 0
      %580 = vmatprep.mubr.bf16.mxu0 0
      %581 = vmatmul.mubr.bf16.gmra.mxu0 %v537
      %v582 = vpop.f32.mrf.mxu0
      %v583 = vadd.f32 0.0, %v582
      %v584 = vpop.f32.mrf.mxu0
      %v585 = vadd.f32 0.0, %v584
      %v586 = vpop.f32.mrf.mxu0
      %v587 = vpop.f32.mrf.mxu0
      %588 = vdwg.mxu0
      %589 = vmatprep.subr.bf16.mxu0 0
      %590 = vmatpush1.bf16.msra.mxu0 0
      %591 = vmatprep.subr.bf16.mxu0 0
      %592 = vmatpush1.bf16.msra.mxu0 0
      %593 = vmatprep.subr.bf16.mxu0 0
      %594 = vmatpush1.bf16.msra.mxu0 0
      %595 = vmatprep.subr.bf16.mxu0 0
      %596 = vmatpush1.bf16.msra.mxu0 0
      %597 = vmatprep.subr.bf16.mxu0 0
      %598 = vmatpush1.bf16.msra.mxu0 0
      %599 = vmatprep.subr.bf16.mxu0 0
      %600 = vmatpush1.bf16.msra.mxu0 0
      %601 = vmatprep.subr.bf16.mxu0 0
      %602 = vmatpush1.bf16.msra.mxu0 0
      %603 = vmatprep.subr.bf16.mxu0 0
      %604 = vmatpush1.bf16.msra.mxu0 %v546
      %605 = vmatprep.subr.bf16.mxu0 0
      %606 = vmatpush2.bf16.msra.mxu0 0
      %607 = vmatprep.subr.bf16.mxu0 0
      %608 = vmatpush2.bf16.msra.mxu0 0
      %609 = vmatprep.subr.bf16.mxu0 0
      %610 = vmatpush2.bf16.msra.mxu0 0
      %611 = vmatprep.subr.bf16.mxu0 0
      %612 = vmatpush2.bf16.msra.mxu0 0
      %613 = vmatprep.subr.bf16.mxu0 0
      %614 = vmatpush2.bf16.msra.mxu0 0
      %615 = vmatprep.subr.bf16.mxu0 0
      %616 = vmatpush2.bf16.msra.mxu0 0
      %617 = vmatprep.subr.bf16.mxu0 0
      %618 = vmatpush2.bf16.msra.mxu0 0
      %619 = vmatprep.subr.bf16.mxu0 0
      %620 = vmatpush2.bf16.msra.mxu0 0
      %621 = vmatprep.mubr.bf16.mxu0 0
      %622 = vmatmul.mubr.bf16.gmra.mxu0 %v537
      %v623 = vpop.f32.mrf.mxu0
      %v624 = vadd.f32 0.0, %v623
      %v625 = vpop.f32.mrf.mxu0
      %v626 = vpop.f32.mrf.mxu0
      %v627 = vpop.f32.mrf.mxu0
      %628 = vdwg.mxu0
      %v629 = vadd.f32 %v522, %v583
      %v630 = vadd.f32 %v523, %v585
      %v631 = vadd.f32 %v524, %v624
      %s632 = scalar_lea.vmem %s1, 16
      %v633 = vld [vmem:[%s632] sm:$0xf]
      %634 = vrot.lane.b32.xlu0 %v218, 109
      %v635 = vpop.permute.xlu0 %634
      %636 = vrot.lane.b32.xlu0 %v219, 109
      %v637 = vpop.permute.xlu0 %636
      %638 = vrot.lane.b32.xlu0 %v220, 109
      %v639 = vpop.permute.xlu0 %638
      %vm640 = vcmask 891904
      %v641 = vsel %vm640, %v635, %v637
      %v642 = vsel %vm640, %v637, %v639
      %v644 = vsel %vm230, %v633, 0
      %v647 = vsel %vm234, %v641, 0
      %v650 = vsel %vm234, %v642, 0
      %v653 = vsel %vm234, %v639, 0
      %655 = vmatprep.subr.bf16.mxu0 0
      %656 = vmatpush1.bf16.msra.mxu0 0
      %657 = vmatprep.subr.bf16.mxu0 0
      %658 = vmatpush1.bf16.msra.mxu0 0
      %659 = vmatprep.subr.bf16.mxu0 0
      %660 = vmatpush1.bf16.msra.mxu0 0
      %661 = vmatprep.subr.bf16.mxu0 0
      %662 = vmatpush1.bf16.msra.mxu0 0
      %663 = vmatprep.subr.bf16.mxu0 0
      %664 = vmatpush1.bf16.msra.mxu0 0
      %665 = vmatprep.subr.bf16.mxu0 0
      %666 = vmatpush1.bf16.msra.mxu0 0
      %667 = vmatprep.subr.bf16.mxu0 0
      %668 = vmatpush1.bf16.msra.mxu0 0
      %669 = vmatprep.subr.bf16.mxu0 %v650
      %670 = vmatpush1.bf16.msra.mxu0 %v647
      %671 = vmatprep.subr.bf16.mxu0 0
      %672 = vmatpush2.bf16.msra.mxu0 0
      %673 = vmatprep.subr.bf16.mxu0 0
      %674 = vmatpush2.bf16.msra.mxu0 0
      %675 = vmatprep.subr.bf16.mxu0 0
      %676 = vmatpush2.bf16.msra.mxu0 0
      %677 = vmatprep.subr.bf16.mxu0 0
      %678 = vmatpush2.bf16.msra.mxu0 0
      %679 = vmatprep.subr.bf16.mxu0 0
      %680 = vmatpush2.bf16.msra.mxu0 0
      %681 = vmatprep.subr.bf16.mxu0 0
      %682 = vmatpush2.bf16.msra.mxu0 0
      %683 = vmatprep.subr.bf16.mxu0 0
      %684 = vmatpush2.bf16.msra.mxu0 0
      %685 = vmatprep.subr.bf16.mxu0 0
      %686 = vmatpush2.bf16.msra.mxu0 0
      %687 = vmatprep.mubr.bf16.mxu0 0
      %688 = vmatmul.mubr.bf16.gmra.mxu0 %v644
      %v689 = vpop.f32.mrf.mxu0
      %v690 = vadd.f32 0.0, %v689
      %v691 = vpop.f32.mrf.mxu0
      %v692 = vadd.f32 0.0, %v691
      %v693 = vpop.f32.mrf.mxu0
      %v694 = vpop.f32.mrf.mxu0
      %695 = vdwg.mxu0
      %696 = vmatprep.subr.bf16.mxu0 0
      %697 = vmatpush1.bf16.msra.mxu0 0
      %698 = vmatprep.subr.bf16.mxu0 0
      %699 = vmatpush1.bf16.msra.mxu0 0
      %700 = vmatprep.subr.bf16.mxu0 0
      %701 = vmatpush1.bf16.msra.mxu0 0
      %702 = vmatprep.subr.bf16.mxu0 0
      %703 = vmatpush1.bf16.msra.mxu0 0
      %704 = vmatprep.subr.bf16.mxu0 0
      %705 = vmatpush1.bf16.msra.mxu0 0
      %706 = vmatprep.subr.bf16.mxu0 0
      %707 = vmatpush1.bf16.msra.mxu0 0
      %708 = vmatprep.subr.bf16.mxu0 0
      %709 = vmatpush1.bf16.msra.mxu0 0
      %710 = vmatprep.subr.bf16.mxu0 0
      %711 = vmatpush1.bf16.msra.mxu0 %v653
      %712 = vmatprep.subr.bf16.mxu0 0
      %713 = vmatpush2.bf16.msra.mxu0 0
      %714 = vmatprep.subr.bf16.mxu0 0
      %715 = vmatpush2.bf16.msra.mxu0 0
      %716 = vmatprep.subr.bf16.mxu0 0
      %717 = vmatpush2.bf16.msra.mxu0 0
      %718 = vmatprep.subr.bf16.mxu0 0
      %719 = vmatpush2.bf16.msra.mxu0 0
      %720 = vmatprep.subr.bf16.mxu0 0
      %721 = vmatpush2.bf16.msra.mxu0 0
      %722 = vmatprep.subr.bf16.mxu0 0
      %723 = vmatpush2.bf16.msra.mxu0 0
      %724 = vmatprep.subr.bf16.mxu0 0
      %725 = vmatpush2.bf16.msra.mxu0 0
      %726 = vmatprep.subr.bf16.mxu0 0
      %727 = vmatpush2.bf16.msra.mxu0 0
      %728 = vmatprep.mubr.bf16.mxu0 0
      %729 = vmatmul.mubr.bf16.gmra.mxu0 %v644
      %v730 = vpop.f32.mrf.mxu0
      %v731 = vadd.f32 0.0, %v730
      %v732 = vpop.f32.mrf.mxu0
      %v733 = vpop.f32.mrf.mxu0
      %v734 = vpop.f32.mrf.mxu0
      %735 = vdwg.mxu0
      %v736 = vadd.f32 %v629, %v690
      %v737 = vadd.f32 %v630, %v692
      %v738 = vadd.f32 %v631, %v731
      %s739 = scalar_lea.vmem %s1, 20
      %v740 = vld [vmem:[%s739] sm:$0xf]
      %741 = vrot.lane.b32.xlu0 %v218, 108
      %v742 = vpop.permute.xlu0 %741
      %743 = vrot.lane.b32.xlu0 %v219, 108
      %v744 = vpop.permute.xlu0 %743
      %745 = vrot.lane.b32.xlu0 %v220, 108
      %v746 = vpop.permute.xlu0 %745
      %vm747 = vcmask 883712
      %v748 = vsel %vm747, %v742, %v744
      %v749 = vsel %vm747, %v744, %v746
      %v751 = vsel %vm230, %v740, 0
      %v754 = vsel %vm234, %v748, 0
      %v757 = vsel %vm234, %v749, 0
      %v760 = vsel %vm234, %v746, 0
      %762 = vmatprep.subr.bf16.mxu0 0
      %763 = vmatpush1.bf16.msra.mxu0 0
      %764 = vmatprep.subr.bf16.mxu0 0
      %765 = vmatpush1.bf16.msra.mxu0 0
      %766 = vmatprep.subr.bf16.mxu0 0
      %767 = vmatpush1.bf16.msra.mxu0 0
      %768 = vmatprep.subr.bf16.mxu0 0
      %769 = vmatpush1.bf16.msra.mxu0 0
      %770 = vmatprep.subr.bf16.mxu0 0
      %771 = vmatpush1.bf16.msra.mxu0 0
      %772 = vmatprep.subr.bf16.mxu0 0
      %773 = vmatpush1.bf16.msra.mxu0 0
      %774 = vmatprep.subr.bf16.mxu0 0
      %775 = vmatpush1.bf16.msra.mxu0 0
      %776 = vmatprep.subr.bf16.mxu0 %v757
      %777 = vmatpush1.bf16.msra.mxu0 %v754
      %778 = vmatprep.subr.bf16.mxu0 0
      %779 = vmatpush2.bf16.msra.mxu0 0
      %780 = vmatprep.subr.bf16.mxu0 0
      %781 = vmatpush2.bf16.msra.mxu0 0
      %782 = vmatprep.subr.bf16.mxu0 0
      %783 = vmatpush2.bf16.msra.mxu0 0
      %784 = vmatprep.subr.bf16.mxu0 0
      %785 = vmatpush2.bf16.msra.mxu0 0
      %786 = vmatprep.subr.bf16.mxu0 0
      %787 = vmatpush2.bf16.msra.mxu0 0
      %788 = vmatprep.subr.bf16.mxu0 0
      %789 = vmatpush2.bf16.msra.mxu0 0
      %790 = vmatprep.subr.bf16.mxu0 0
      %791 = vmatpush2.bf16.msra.mxu0 0
      %792 = vmatprep.subr.bf16.mxu0 0
      %793 = vmatpush2.bf16.msra.mxu0 0
      %794 = vmatprep.mubr.bf16.mxu0 0
      %795 = vmatmul.mubr.bf16.gmra.mxu0 %v751
      %v796 = vpop.f32.mrf.mxu0
      %v797 = vadd.f32 0.0, %v796
      %v798 = vpop.f32.mrf.mxu0
      %v799 = vadd.f32 0.0, %v798
      %v800 = vpop.f32.mrf.mxu0
      %v801 = vpop.f32.mrf.mxu0
      %802 = vdwg.mxu0
      %803 = vmatprep.subr.bf16.mxu0 0
      %804 = vmatpush1.bf16.msra.mxu0 0
      %805 = vmatprep.subr.bf16.mxu0 0
      %806 = vmatpush1.bf16.msra.mxu0 0
      %807 = vmatprep.subr.bf16.mxu0 0
      %808 = vmatpush1.bf16.msra.mxu0 0
      %809 = vmatprep.subr.bf16.mxu0 0
      %810 = vmatpush1.bf16.msra.mxu0 0
      %811 = vmatprep.subr.bf16.mxu0 0
      %812 = vmatpush1.bf16.msra.mxu0 0
      %813 = vmatprep.subr.bf16.mxu0 0
      %814 = vmatpush1.bf16.msra.mxu0 0
      %815 = vmatprep.subr.bf16.mxu0 0
      %816 = vmatpush1.bf16.msra.mxu0 0
      %817 = vmatprep.subr.bf16.mxu0 0
      %818 = vmatpush1.bf16.msra.mxu0 %v760
      %819 = vmatprep.subr.bf16.mxu0 0
      %820 = vmatpush2.bf16.msra.mxu0 0
      %821 = vmatprep.subr.bf16.mxu0 0
      %822 = vmatpush2.bf16.msra.mxu0 0
      %823 = vmatprep.subr.bf16.mxu0 0
      %824 = vmatpush2.bf16.msra.mxu0 0
      %825 = vmatprep.subr.bf16.mxu0 0
      %826 = vmatpush2.bf16.msra.mxu0 0
      %827 = vmatprep.subr.bf16.mxu0 0
      %828 = vmatpush2.bf16.msra.mxu0 0
      %829 = vmatprep.subr.bf16.mxu0 0
      %830 = vmatpush2.bf16.msra.mxu0 0
      %831 = vmatprep.subr.bf16.mxu0 0
      %832 = vmatpush2.bf16.msra.mxu0 0
      %833 = vmatprep.subr.bf16.mxu0 0
      %834 = vmatpush2.bf16.msra.mxu0 0
      %835 = vmatprep.mubr.bf16.mxu0 0
      %836 = vmatmul.mubr.bf16.gmra.mxu0 %v751
      %v837 = vpop.f32.mrf.mxu0
      %v838 = vadd.f32 0.0, %v837
      %v839 = vpop.f32.mrf.mxu0
      %v840 = vpop.f32.mrf.mxu0
      %v841 = vpop.f32.mrf.mxu0
      %842 = vdwg.mxu0
      %v843 = vadd.f32 %v736, %v797
      %v844 = vadd.f32 %v737, %v799
      %v845 = vadd.f32 %v738, %v838
      %s846 = scalar_lea.vmem %s1, 24
      %v847 = vld [vmem:[%s846] sm:$0xf]
      %848 = vrot.lane.b32.xlu0 %v218, 92
      %v849 = vpop.permute.xlu0 %848
      %850 = vrot.lane.b32.xlu0 %v219, 92
      %v851 = vpop.permute.xlu0 %850
      %852 = vrot.lane.b32.xlu0 %v220, 92
      %v853 = vpop.permute.xlu0 %852
      %vm854 = vcmask 752640
      %v855 = vsel %vm854, %v849, %v851
      %v856 = vsel %vm854, %v851, %v853
      %v858 = vsel %vm230, %v847, 0
      %v861 = vsel %vm234, %v855, 0
      %v864 = vsel %vm234, %v856, 0
      %v867 = vsel %vm234, %v853, 0
      %869 = vmatprep.subr.bf16.mxu0 0
      %870 = vmatpush1.bf16.msra.mxu0 0
      %871 = vmatprep.subr.bf16.mxu0 0
      %872 = vmatpush1.bf16.msra.mxu0 0
      %873 = vmatprep.subr.bf16.mxu0 0
      %874 = vmatpush1.bf16.msra.mxu0 0
      %875 = vmatprep.subr.bf16.mxu0 0
      %876 = vmatpush1.bf16.msra.mxu0 0
      %877 = vmatprep.subr.bf16.mxu0 0
      %878 = vmatpush1.bf16.msra.mxu0 0
      %879 = vmatprep.subr.bf16.mxu0 0
      %880 = vmatpush1.bf16.msra.mxu0 0
      %881 = vmatprep.subr.bf16.mxu0 0
      %882 = vmatpush1.bf16.msra.mxu0 0
      %883 = vmatprep.subr.bf16.mxu0 %v864
      %884 = vmatpush1.bf16.msra.mxu0 %v861
      %885 = vmatprep.subr.bf16.mxu0 0
      %886 = vmatpush2.bf16.msra.mxu0 0
      %887 = vmatprep.subr.bf16.mxu0 0
      %888 = vmatpush2.bf16.msra.mxu0 0
      %889 = vmatprep.subr.bf16.mxu0 0
      %890 = vmatpush2.bf16.msra.mxu0 0
      %891 = vmatprep.subr.bf16.mxu0 0
      %892 = vmatpush2.bf16.msra.mxu0 0
      %893 = vmatprep.subr.bf16.mxu0 0
      %894 = vmatpush2.bf16.msra.mxu0 0
      %895 = vmatprep.subr.bf16.mxu0 0
      %896 = vmatpush2.bf16.msra.mxu0 0
      %897 = vmatprep.subr.bf16.mxu0 0
      %898 = vmatpush2.bf16.msra.mxu0 0
      %899 = vmatprep.subr.bf16.mxu0 0
      %900 = vmatpush2.bf16.msra.mxu0 0
      %901 = vmatprep.mubr.bf16.mxu0 0
      %902 = vmatmul.mubr.bf16.gmra.mxu0 %v858
      %v903 = vpop.f32.mrf.mxu0
      %v904 = vadd.f32 0.0, %v903
      %v905 = vpop.f32.mrf.mxu0
      %v906 = vadd.f32 0.0, %v905
      %v907 = vpop.f32.mrf.mxu0
      %v908 = vpop.f32.mrf.mxu0
      %909 = vdwg.mxu0
      %910 = vmatprep.subr.bf16.mxu0 0
      %911 = vmatpush1.bf16.msra.mxu0 0
      %912 = vmatprep.subr.bf16.mxu0 0
      %913 = vmatpush1.bf16.msra.mxu0 0
      %914 = vmatprep.subr.bf16.mxu0 0
      %915 = vmatpush1.bf16.msra.mxu0 0
      %916 = vmatprep.subr.bf16.mxu0 0
      %917 = vmatpush1.bf16.msra.mxu0 0
      %918 = vmatprep.subr.bf16.mxu0 0
      %919 = vmatpush1.bf16.msra.mxu0 0
      %920 = vmatprep.subr.bf16.mxu0 0
      %921 = vmatpush1.bf16.msra.mxu0 0
      %922 = vmatprep.subr.bf16.mxu0 0
      %923 = vmatpush1.bf16.msra.mxu0 0
      %924 = vmatprep.subr.bf16.mxu0 0
      %925 = vmatpush1.bf16.msra.mxu0 %v867
      %926 = vmatprep.subr.bf16.mxu0 0
      %927 = vmatpush2.bf16.msra.mxu0 0
      %928 = vmatprep.subr.bf16.mxu0 0
      %929 = vmatpush2.bf16.msra.mxu0 0
      %930 = vmatprep.subr.bf16.mxu0 0
      %931 = vmatpush2.bf16.msra.mxu0 0
      %932 = vmatprep.subr.bf16.mxu0 0
      %933 = vmatpush2.bf16.msra.mxu0 0
      %934 = vmatprep.subr.bf16.mxu0 0
      %935 = vmatpush2.bf16.msra.mxu0 0
      %936 = vmatprep.subr.bf16.mxu0 0
      %937 = vmatpush2.bf16.msra.mxu0 0
      %938 = vmatprep.subr.bf16.mxu0 0
      %939 = vmatpush2.bf16.msra.mxu0 0
      %940 = vmatprep.subr.bf16.mxu0 0
      %941 = vmatpush2.bf16.msra.mxu0 0
      %942 = vmatprep.mubr.bf16.mxu0 0
      %943 = vmatmul.mubr.bf16.gmra.mxu0 %v858
      %v944 = vpop.f32.mrf.mxu0
      %v945 = vadd.f32 0.0, %v944
      %v946 = vpop.f32.mrf.mxu0
      %v947 = vpop.f32.mrf.mxu0
      %v948 = vpop.f32.mrf.mxu0
      %949 = vdwg.mxu0
      %v950 = vadd.f32 %v843, %v904
      %v951 = vadd.f32 %v844, %v906
      %v952 = vadd.f32 %v845, %v945
      %s953 = scalar_lea.vmem %s1, 28
      %v954 = vld [vmem:[%s953] sm:$0xf]
      %955 = vrot.lane.b32.xlu0 %v218, 91
      %v956 = vpop.permute.xlu0 %955
      %957 = vrot.lane.b32.xlu0 %v219, 91
      %v958 = vpop.permute.xlu0 %957
      %959 = vrot.lane.b32.xlu0 %v220, 91
      %v960 = vpop.permute.xlu0 %959
      %vm961 = vcmask 744448
      %v962 = vsel %vm961, %v956, %v958
      %v963 = vsel %vm961, %v958, %v960
      %v965 = vsel %vm230, %v954, 0
      %v968 = vsel %vm234, %v962, 0
      %v971 = vsel %vm234, %v963, 0
      %v974 = vsel %vm234, %v960, 0
      %976 = vmatprep.subr.bf16.mxu0 0
      %977 = vmatpush1.bf16.msra.mxu0 0
      %978 = vmatprep.subr.bf16.mxu0 0
      %979 = vmatpush1.bf16.msra.mxu0 0
      %980 = vmatprep.subr.bf16.mxu0 0
      %981 = vmatpush1.bf16.msra.mxu0 0
      %982 = vmatprep.subr.bf16.mxu0 0
      %983 = vmatpush1.bf16.msra.mxu0 0
      %984 = vmatprep.subr.bf16.mxu0 0
      %985 = vmatpush1.bf16.msra.mxu0 0
      %986 = vmatprep.subr.bf16.mxu0 0
      %987 = vmatpush1.bf16.msra.mxu0 0
      %988 = vmatprep.subr.bf16.mxu0 0
      %989 = vmatpush1.bf16.msra.mxu0 0
      %990 = vmatprep.subr.bf16.mxu0 %v971
      %991 = vmatpush1.bf16.msra.mxu0 %v968
      %992 = vmatprep.subr.bf16.mxu0 0
      %993 = vmatpush2.bf16.msra.mxu0 0
      %994 = vmatprep.subr.bf16.mxu0 0
      %995 = vmatpush2.bf16.msra.mxu0 0
      %996 = vmatprep.subr.bf16.mxu0 0
      %997 = vmatpush2.bf16.msra.mxu0 0
      %998 = vmatprep.subr.bf16.mxu0 0
      %999 = vmatpush2.bf16.msra.mxu0 0
      %1000 = vmatprep.subr.bf16.mxu0 0
      %1001 = vmatpush2.bf16.msra.mxu0 0
      %1002 = vmatprep.subr.bf16.mxu0 0
      %1003 = vmatpush2.bf16.msra.mxu0 0
      %1004 = vmatprep.subr.bf16.mxu0 0
      %1005 = vmatpush2.bf16.msra.mxu0 0
      %1006 = vmatprep.subr.bf16.mxu0 0
      %1007 = vmatpush2.bf16.msra.mxu0 0
      %1008 = vmatprep.mubr.bf16.mxu0 0
      %1009 = vmatmul.mubr.bf16.gmra.mxu0 %v965
      %v1010 = vpop.f32.mrf.mxu0
      %v1011 = vadd.f32 0.0, %v1010
      %v1012 = vpop.f32.mrf.mxu0
      %v1013 = vadd.f32 0.0, %v1012
      %v1014 = vpop.f32.mrf.mxu0
      %v1015 = vpop.f32.mrf.mxu0
      %1016 = vdwg.mxu0
      %1017 = vmatprep.subr.bf16.mxu0 0
      %1018 = vmatpush1.bf16.msra.mxu0 0
      %1019 = vmatprep.subr.bf16.mxu0 0
      %1020 = vmatpush1.bf16.msra.mxu0 0
      %1021 = vmatprep.subr.bf16.mxu0 0
      %1022 = vmatpush1.bf16.msra.mxu0 0
      %1023 = vmatprep.subr.bf16.mxu0 0
      %1024 = vmatpush1.bf16.msra.mxu0 0
      %1025 = vmatprep.subr.bf16.mxu0 0
      %1026 = vmatpush1.bf16.msra.mxu0 0
      %1027 = vmatprep.subr.bf16.mxu0 0
      %1028 = vmatpush1.bf16.msra.mxu0 0
      %1029 = vmatprep.subr.bf16.mxu0 0
      %1030 = vmatpush1.bf16.msra.mxu0 0
      %1031 = vmatprep.subr.bf16.mxu0 0
      %1032 = vmatpush1.bf16.msra.mxu0 %v974
      %1033 = vmatprep.subr.bf16.mxu0 0
      %1034 = vmatpush2.bf16.msra.mxu0 0
      %1035 = vmatprep.subr.bf16.mxu0 0
      %1036 = vmatpush2.bf16.msra.mxu0 0
      %1037 = vmatprep.subr.bf16.mxu0 0
      %1038 = vmatpush2.bf16.msra.mxu0 0
      %1039 = vmatprep.subr.bf16.mxu0 0
      %1040 = vmatpush2.bf16.msra.mxu0 0
      %1041 = vmatprep.subr.bf16.mxu0 0
      %1042 = vmatpush2.bf16.msra.mxu0 0
      %1043 = vmatprep.subr.bf16.mxu0 0
      %1044 = vmatpush2.bf16.msra.mxu0 0
      %1045 = vmatprep.subr.bf16.mxu0 0
      %1046 = vmatpush2.bf16.msra.mxu0 0
      %1047 = vmatprep.subr.bf16.mxu0 0
      %1048 = vmatpush2.bf16.msra.mxu0 0
      %1049 = vmatprep.mubr.bf16.mxu0 0
      %1050 = vmatmul.mubr.bf16.gmra.mxu0 %v965
      %v1051 = vpop.f32.mrf.mxu0
      %v1052 = vadd.f32 0.0, %v1051
      %v1053 = vpop.f32.mrf.mxu0
      %v1054 = vpop.f32.mrf.mxu0
      %v1055 = vpop.f32.mrf.mxu0
      %1056 = vdwg.mxu0
      %v1057 = vadd.f32 %v950, %v1011
      %v1058 = vadd.f32 %v951, %v1013
      %v1059 = vadd.f32 %v952, %v1052
      %s1060 = scalar_lea.vmem %s1, 32
      %v1061 = vld [vmem:[%s1060] sm:$0xf]
      %1062 = vrot.lane.b32.xlu0 %v218, 90
      %v1063 = vpop.permute.xlu0 %1062
      %1064 = vrot.lane.b32.xlu0 %v219, 90
      %v1065 = vpop.permute.xlu0 %1064
      %1066 = vrot.lane.b32.xlu0 %v220, 90
      %v1067 = vpop.permute.xlu0 %1066
      %vm1068 = vcmask 736256
      %v1069 = vsel %vm1068, %v1063, %v1065
      %v1070 = vsel %vm1068, %v1065, %v1067
      %v1072 = vsel %vm230, %v1061, 0
      %v1075 = vsel %vm234, %v1069, 0
      %v1078 = vsel %vm234, %v1070, 0
      %v1081 = vsel %vm234, %v1067, 0
      %1083 = vmatprep.subr.bf16.mxu0 0
      %1084 = vmatpush1.bf16.msra.mxu0 0
      %1085 = vmatprep.subr.bf16.mxu0 0
      %1086 = vmatpush1.bf16.msra.mxu0 0
      %1087 = vmatprep.subr.bf16.mxu0 0
      %1088 = vmatpush1.bf16.msra.mxu0 0
      %1089 = vmatprep.subr.bf16.mxu0 0
      %1090 = vmatpush1.bf16.msra.mxu0 0
      %1091 = vmatprep.subr.bf16.mxu0 0
      %1092 = vmatpush1.bf16.msra.mxu0 0
      %1093 = vmatprep.subr.bf16.mxu0 0
      %1094 = vmatpush1.bf16.msra.mxu0 0
      %1095 = vmatprep.subr.bf16.mxu0 0
      %1096 = vmatpush1.bf16.msra.mxu0 0
      %1097 = vmatprep.subr.bf16.mxu0 %v1078
      %1098 = vmatpush1.bf16.msra.mxu0 %v1075
      %1099 = vmatprep.subr.bf16.mxu0 0
      %1100 = vmatpush2.bf16.msra.mxu0 0
      %1101 = vmatprep.subr.bf16.mxu0 0
      %1102 = vmatpush2.bf16.msra.mxu0 0
      %1103 = vmatprep.subr.bf16.mxu0 0
      %1104 = vmatpush2.bf16.msra.mxu0 0
      %1105 = vmatprep.subr.bf16.mxu0 0
      %1106 = vmatpush2.bf16.msra.mxu0 0
      %1107 = vmatprep.subr.bf16.mxu0 0
      %1108 = vmatpush2.bf16.msra.mxu0 0
      %1109 = vmatprep.subr.bf16.mxu0 0
      %1110 = vmatpush2.bf16.msra.mxu0 0
      %1111 = vmatprep.subr.bf16.mxu0 0
      %1112 = vmatpush2.bf16.msra.mxu0 0
      %1113 = vmatprep.subr.bf16.mxu0 0
      %1114 = vmatpush2.bf16.msra.mxu0 0
      %1115 = vmatprep.mubr.bf16.mxu0 0
      %1116 = vmatmul.mubr.bf16.gmra.mxu0 %v1072
      %v1117 = vpop.f32.mrf.mxu0
      %v1118 = vadd.f32 0.0, %v1117
      %v1119 = vpop.f32.mrf.mxu0
      %v1120 = vadd.f32 0.0, %v1119
      %v1121 = vpop.f32.mrf.mxu0
      %v1122 = vpop.f32.mrf.mxu0
      %1123 = vdwg.mxu0
      %1124 = vmatprep.subr.bf16.mxu0 0
      %1125 = vmatpush1.bf16.msra.mxu0 0
      %1126 = vmatprep.subr.bf16.mxu0 0
      %1127 = vmatpush1.bf16.msra.mxu0 0
      %1128 = vmatprep.subr.bf16.mxu0 0
      %1129 = vmatpush1.bf16.msra.mxu0 0
      %1130 = vmatprep.subr.bf16.mxu0 0
      %1131 = vmatpush1.bf16.msra.mxu0 0
      %1132 = vmatprep.subr.bf16.mxu0 0
      %1133 = vmatpush1.bf16.msra.mxu0 0
      %1134 = vmatprep.subr.bf16.mxu0 0
      %1135 = vmatpush1.bf16.msra.mxu0 0
      %1136 = vmatprep.subr.bf16.mxu0 0
      %1137 = vmatpush1.bf16.msra.mxu0 0
      %1138 = vmatprep.subr.bf16.mxu0 0
      %1139 = vmatpush1.bf16.msra.mxu0 %v1081
      %1140 = vmatprep.subr.bf16.mxu0 0
      %1141 = vmatpush2.bf16.msra.mxu0 0
      %1142 = vmatprep.subr.bf16.mxu0 0
      %1143 = vmatpush2.bf16.msra.mxu0 0
      %1144 = vmatprep.subr.bf16.mxu0 0
      %1145 = vmatpush2.bf16.msra.mxu0 0
      %1146 = vmatprep.subr.bf16.mxu0 0
      %1147 = vmatpush2.bf16.msra.mxu0 0
      %1148 = vmatprep.subr.bf16.mxu0 0
      %1149 = vmatpush2.bf16.msra.mxu0 0
      %1150 = vmatprep.subr.bf16.mxu0 0
      %1151 = vmatpush2.bf16.msra.mxu0 0
      %1152 = vmatprep.subr.bf16.mxu0 0
      %1153 = vmatpush2.bf16.msra.mxu0 0
      %1154 = vmatprep.subr.bf16.mxu0 0
      %1155 = vmatpush2.bf16.msra.mxu0 0
      %1156 = vmatprep.mubr.bf16.mxu0 0
      %1157 = vmatmul.mubr.bf16.gmra.mxu0 %v1072
      %v1158 = vpop.f32.mrf.mxu0
      %v1159 = vadd.f32 0.0, %v1158
      %v1160 = vpop.f32.mrf.mxu0
      %v1161 = vpop.f32.mrf.mxu0
      %v1162 = vpop.f32.mrf.mxu0
      %1163 = vdwg.mxu0
      %v1164 = vadd.f32 %v1057, %v1118
      %v1165 = vadd.f32 %v1058, %v1120
      %v1166 = vadd.f32 %v1059, %v1159
      // Predicated region
      $region41: #{conv_block.1} parent=35 // pred_check
        %p1167 = pneg %p196
      $region42: #{conv_block.1} parent=35 // pred_check_branch
        %1169 = sbr.rel (%p1167) target = $region44
      $region43: #{conv_block.1} parent=35 // pred_region
        %v1170 = vlaneseq
        %v1171 = vand.u32 %v1170, 127
        %v1172 = vadd.s32 %v1171, 128
        %v1173 = vadd.s32 %v1171, 256
        %vm1174 = vcmp.lt.s32.totalorder %v1171, 0
        %v1175 = vsub.s32 0, %v1171
        %v1176 = vsel %vm1174, %v1175, %v1171
        %v1177 = vmul.u32.u64.compose %v1176, 3817748708
        %v1178 = vextract.low.u32 %v1177
        %v1179 = vextract.high.u32 %v1177
        %v1180 = vshrl.u32 %v1179, 4
        %v1181 = vmul.u32 %v1180, 18
        %v1182 = vsub.s32 %v1176, %v1181
        %v1183 = vsub.s32 0, %v1182
        %v1184 = vsel %vm1174, %v1183, %v1182
        %vm1185 = vcmp.lt.s32.totalorder %v1172, 0
        %v1186 = vsub.s32 0, %v1172
        %v1187 = vsel %vm1185, %v1186, %v1172
        %v1188 = vmul.u32.u64.compose %v1187, 3817748708
        %v1189 = vextract.low.u32 %v1188
        %v1190 = vextract.high.u32 %v1188
        %v1191 = vshrl.u32 %v1190, 4
        %v1192 = vmul.u32 %v1191, 18
        %v1193 = vsub.s32 %v1187, %v1192
        %v1194 = vsub.s32 0, %v1193
        %v1195 = vsel %vm1185, %v1194, %v1193
        %vm1196 = vcmp.lt.s32.totalorder %v1173, 0
        %v1197 = vsub.s32 0, %v1173
        %v1198 = vsel %vm1196, %v1197, %v1173
        %v1199 = vmul.u32.u64.compose %v1198, 3817748708
        %v1200 = vextract.low.u32 %v1199
        %v1201 = vextract.high.u32 %v1199
        %v1202 = vshrl.u32 %v1201, 4
        %v1203 = vmul.u32 %v1202, 18
        %v1204 = vsub.s32 %v1198, %v1203
        %v1205 = vsub.s32 0, %v1204
        %v1206 = vsel %vm1196, %v1205, %v1204
        %vm1207 = vcmp.ne.s32.totalorder %v1184, 0
        %vm1208 = vcmp.ne.s32.totalorder %v1195, 0
        %vm1209 = vcmp.ne.s32.totalorder %v1206, 0
        %vm1210 = vcmp.lt.s32.totalorder %v1184, 0
        %vm1211 = vcmp.lt.s32.totalorder %v1195, 0
        %vm1212 = vcmp.lt.s32.totalorder %v1206, 0
        %vm1213 = vmand %vm1210, %vm1207
        %vm1214 = vmand %vm1211, %vm1208
        %vm1215 = vmand %vm1212, %vm1209
        %v1216 = vadd.s32 %v1184, 18
        %v1217 = vadd.s32 %v1195, 18
        %v1218 = vadd.s32 %v1206, 18
        %v1219 = vsel %vm1213, %v1216, %v1184
        %v1220 = vsel %vm1214, %v1217, %v1195
        %v1221 = vsel %vm1215, %v1218, %v1206
        %vm1222 = vcmp.lt.s32.totalorder %v1219, 16
        %vm1223 = vcmp.lt.s32.totalorder %v1220, 16
        %vm1224 = vcmp.lt.s32.totalorder %v1221, 16
        %v1225 = vsel %vm1222, 1, 0
        %v1226 = vsel %vm1223, 1, 0
        %v1227 = vsel %vm1224, 1, 0
        %vm1228 = vcmp.eq.s32.totalorder %v1225, 1
        %vm1229 = vcmp.eq.s32.totalorder %v1226, 1
        %vm1230 = vcmp.eq.s32.totalorder %v1227, 1
        %v1231 = vsel %vm1228, %v1164, 0.0
        %v1232 = vsel %vm1229, %v1165, 0.0
        %v1233 = vsel %vm1230, %v1166, 0.0
        %v1234 = vld [vmem:[#allocation2] sm:$0xff]
        %v1235 = vadd.f32 %v1231, %v1232
        %vm1236 = vcmask 261120
        %v1237 = vsel %vm1236, %v1233, 0.0
        %v1238 = vadd.f32 %v1235, %v1237
        %1239 = vadd.xlane.f32.xlu0 %v1238
        %v1240 = vpop.xlane.xlu0 %1239
        %v1241 = vadd.f32 %v1234, %v1240
        %vm1242 = vcmask 7168
        %1243 = vst.msk [vmem:[#allocation2] sm:$0xff] %vm1242, %v1241
        %v1244 = vld [vmem:[#allocation3] sm:$0xff]
        %v1245 = vmul.f32 %v1231, %v1231
        %v1246 = vmul.f32 %v1232, %v1232
        %v1247 = vmul.f32 %v1233, %v1233
        %v1248 = vadd.f32 %v1245, %v1246
        %v1249 = vsel %vm1236, %v1247, 0.0
        %v1250 = vadd.f32 %v1248, %v1249
        %1251 = vadd.xlane.f32.xlu0 %v1250
        %v1252 = vpop.xlane.xlu0 %1251
        %v1253 = vadd.f32 %v1244, %v1252
        %1254 = vst.msk [vmem:[#allocation3] sm:$0xff] %vm1242, %v1253
      $region44: #{conv_block.1} parent=35 // pred_fallthru
        _
      %p1255 = scmp.eq.s32.totalorder %s19, 1
      %p1256 = pnand %p1255, %p197
      %p1257 = pneg %p1256
      // Predicated region
      $region45: #{conv_block.1} parent=35 // pred_check
        _
      $region46: #{conv_block.1} parent=35 // pred_check_branch
        %1259 = sbr.rel (%p1256) target = $region48
      $region47: #{conv_block.1} parent=35 // pred_region
        %v1260 = vld [vmem:[#allocation2] sm:$0xff]
        %v1261 = vmul.f32 %v1260, 0.001953125
        %v1262 = vld [vmem:[#allocation3] sm:$0xff]
        %v1263 = vmul.f32 %v1262, 0.001953125
        %v1264 = vmul.f32 %v1261, %v1261
        %v1265 = vsub.f32 %v1263, %v1264
        %v1266 = vadd.f32 %v1265, 1e-05
        %v1267 = vrsqrt.pop %v1266
        %v1268 = vld [vmem:[%s2] sm:$0xff]
        %v1269 = vmul.f32 %v1267, %v1268
        %v1270 = vld [vmem:[%s3] sm:$0xff]
        %v1271 = vmul.f32 %v1261, %v1269
        %v1272 = vsub.f32 %v1270, %v1271
        %vm1273 = vcmask 7168
        %1274 = vst.msk [vmem:[#allocation2] sm:$0xff] %vm1273, %v1269
        %1275 = vst.msk [vmem:[#allocation3] sm:$0xff] %vm1273, %v1272
      $region48: #{conv_block.1} parent=35 // pred_fallthru
        _
      // Predicated region
      $region49: #{conv_block.1} parent=35 // pred_check
        %p1276 = pneg %p1255
      $region50: #{conv_block.1} parent=35 // pred_check_branch
        %1278 = sbr.rel (%p1276) target = $region52
      $region51: #{conv_block.1} parent=35 // pred_region
        %v1279 = vld [vmem:[#allocation2] sm:$0xff]
        %1281 = vset.pattern.permute.xlu0 0
        %1282 = vperm.xlu0 %1281, %v1279
        %v1283 = vpop.permute.xlu0 %1282
        %v1285 = vmul.f32 %v1164, %v1283
        %v1286 = vmul.f32 %v1165, %v1283
        %v1287 = vmul.f32 %v1166, %v1283
        %v1288 = vld [vmem:[#allocation3] sm:$0xff]
        %1290 = vset.pattern.permute.xlu0 0
        %1291 = vperm.xlu0 %1290, %v1288
        %v1292 = vpop.permute.xlu0 %1291
        %v1294 = vadd.f32 %v1285, %v1292
        %v1295 = vadd.f32 %v1286, %v1292
        %v1296 = vadd.f32 %v1287, %v1292
        %v1297 = vmax.f32 %v1294, 0.0
        %v1298 = vmax.f32 %v1295, 0.0
        %v1299 = vmax.f32 %v1296, 0.0
        %1300 = vst [vmem:[%s193] sm:$0xff] %v1297
        %1301 = vst [vmem:[%s193 + $0x8] sm:$0xff] %v1298
        %vm1302 = vcmask 261120
        %1303 = vst.msk [vmem:[%s193 + $0x10] sm:$0xff] %vm1302, %v1299
      $region52: #{conv_block.1} parent=35 // pred_fallthru
        _
      %s1304 = smul.u32 %s19, %s20
      %p1305 = scmp.lt.s32.totalorder %s1304, 1
      %s1306 = scalar_select %p1305, %s1304, 1
      %s1307 = smul.addr %s1306, 3
      %s1308 = smul.addr %s1307, 8
      %s1309 = scalar_lea.vmem %s4, %s1308
      // Predicated region
      $region53: #{conv_block.1} parent=35 // pred_check
        %p1310 = pneg %p131
      $region54: #{conv_block.1} parent=35 // pred_check_branch
        %1312 = sbr.rel (%p1310) target = $region56
      $region55: #{conv_block.1} parent=35 // pred_region
        %s1313 = smul.u32 %s19, %s20
      $region56: #{conv_block.1} parent=35 // pred_fallthru
        _
    $region36: #{conv_block.1} parent=5 // pred_fallthru
      _
    %p1314 = scmp.le.s32.totalorder 2, %s10
    // Predicated region
    $region57: #{conv_block.1} parent=5 // pred_check
      %p1315 = pneg %p1314
    $region58: #{conv_block.1} parent=5 // pred_check_branch
      %1317 = sbr.rel (%p1315) target = $region60
    $region59: #{conv_block.1} parent=5 // pred_region
      %s1318 = ssub.s32 %s10, 2
      // Predicated region
      $region61: #{conv_block.1} parent=59 // pred_check
        %p1319 = pneg %p137
      $region62: #{conv_block.1} parent=59 // pred_check_branch
        %1321 = sbr.rel (%p1319) target = $region64
      $region63: #{conv_block.1} parent=59 // pred_region
        %s1322 = smul.u32 %s21, %s22
        %p1323 = scmp.lt.s32.totalorder %s1322, 1
        %s1324 = scalar_select %p1323, %s1322, 1
        %s1325 = smul.addr %s1324, 3
        %s1326 = smul.addr %s1325, 8
        %s1327 = scalar_lea.vmem %s4, %s1326
      $region64: #{conv_block.1} parent=59 // pred_fallthru
        _
    $region60: #{conv_block.1} parent=5 // pred_fallthru
      _
  $region6: #{conv_block.1} parent=0 // loop_footer
    %s14 = sadd.s32 1, %s10
  $region7: #{conv_block.1} parent=0 // loop_footer_branch
    %9 = sbr.rel target = $region3
  $region8: #{conv_block.1} parent=0 // loop_exit
    _

</llo_original>
